<compile_context>
chip_gen: v6e
topology: v6e:2x2x1
jax: 0.10.0
libtpu: 0.0.40
codegen_flags: <defaults>
</compile_context>

<pallas_src>
import math
import numpy as np
import jax
import jax.numpy as jnp
from jax.experimental import pallas as pl
from jax.experimental.pallas import tpu as pltpu


def _round_up(x, m):
    return ((x + m - 1) // m) * m


def _cdiv(a, b):
    return -(-a // b)


def _nbytes(a):
    return int(np.prod(a.shape)) * a.dtype.itemsize


def _vmem_limit(est_bytes):
    """Generation-aware VMEM budget (no hard 32 MiB clamp)."""
    try:
        cap = int(pltpu.get_tpu_info().vmem_capacity_bytes)
    except Exception:
        cap = 64 << 20
    return int(min(max(32 << 20, 2 * est_bytes + (2 << 20)), int(cap * 0.9)))


def _pick_unroll(tb):
    if tb <= 16:
        return tb
    for u in (8, 4, 2):
        if tb % u == 0:
            return u
    return 1


# ----------------------------- weight preparation -----------------------------
def _gate_pack_rows(w, H, Gp):
    """PyTorch gate-row order (i, f, g, o) -> (i, f, o, g); zero-pad 4H rows -> Gp."""
    gi, gf, gg, go = (w[k * H:(k + 1) * H] for k in range(4))
    w = jnp.concatenate([gi, gf, go, gg], axis=0)
    if Gp > 4 * H:
        w = jnp.pad(w, ((0, Gp - 4 * H),) + ((0, 0),) * (w.ndim - 1))
    return w


def _prep_lstm(w_ih, w_hh, b_ih, b_hh, *, H, Gp, n_in_dir, f_in):
    """-> wih (n_in_dir, f_in, Gp) bf16, whh (H, Gp) bf16, bias (1, Gp) f32."""
    w_ih = jnp.asarray(w_ih, jnp.float32)               # (4H, n_in_dir*f_in)
    w_hh = jnp.asarray(w_hh, jnp.float32)               # (4H, H)
    bias = jnp.asarray(b_ih, jnp.float32) + jnp.asarray(b_hh, jnp.float32)

    w_ih = _gate_pack_rows(w_ih, H, Gp)                  # (Gp, n_in_dir*f_in)
    w_hh = _gate_pack_rows(w_hh, H, Gp)                  # (Gp, H)
    bias = _gate_pack_rows(bias[:, None], H, Gp)[:, 0]   # (Gp,)

    # split input features per input direction (prev layer's fwd / bwd halves)
    wih = jnp.stack([w_ih[:, d * f_in:(d + 1) * f_in].T for d in range(n_in_dir)])
    return (wih.astype(jnp.bfloat16),
            w_hh.T.astype(jnp.bfloat16),
            bias.reshape(1, Gp))


def _prep_fc(fc_w, fc_b, *, H, n_dir, Op):
    """uni -> (H, Op) bf16; bi -> (2, H, Op) bf16 ([0]=fwd rows, [1]=rev rows)."""
    w = jnp.asarray(fc_w, jnp.float32)                   # (O, n_dir*H)
    b = jnp.asarray(fc_b, jnp.float32)
    O = w.shape[0]
    w = jnp.pad(w, ((0, Op - O), (0, 0)))
    b = jnp.pad(b, (0, Op - O)).reshape(1, Op)
    if n_dir == 1:
        return w.T.astype(jnp.bfloat16), b
    wt = jnp.stack([w[:, :H].T, w[:, H:].T]).astype(jnp.bfloat16)
    return wt, b


# ----------------------------- LSTM cell (packed gates) ------------------------
def _cell_math(gates, h, c, H):
    """gates: (B, Gp) f32 with packed layout [i | f | o | g | pad]."""
    h3 = 3 * H
    sig = jax.nn.sigmoid(gates[:, :h3])        # one contiguous sigmoid slab
    g_g = jnp.tanh(gates[:, h3:4 * H])
    c_new = sig[:, H:2 * H] * c + sig[:, :H] * g_g
    h_new = sig[:, 2 * H:h3] * jnp.tanh(c_new)
    return h_new, c_new


# ----------------------------- sequence-output kernel --------------------------
def _make_seq_kernel(*, T_real, T_pad, TB, H, NDI, Fp, Gp, Bp, unroll, out_dtype):
    needs_mask = T_pad != T_real

    def kernel(x_ref, wih_ref, whh_ref, b_ref, out_ref, xp_scr, h_scr, c_scr):
        d = pl.program_id(0)                       # output direction (0 fwd, 1 rev)
        tb = pl.program_id(1)
        n_tb = pl.num_programs(1)
        blk = tb + d * (n_tb - 1 - 2 * tb)         # reversed block order for d == 1
        t0 = blk * TB

        @pl.when(tb == 0)
        def _():
            h_scr[...] = jnp.zeros_like(h_scr)
            c_scr[...] = jnp.zeros_like(c_scr)

        # Hoisted input projection for this time block: one MXU matmul per
        # input direction, bf16 in / f32 accumulate; bias added in f32.
        xp = None
        for di in range(NDI):
            p = jnp.dot(x_ref[di].reshape(TB * Bp, Fp), wih_ref[di],
                        preferred_element_type=jnp.float32)
            xp = p if xp is None else xp + p
        xp_scr[...] = (xp + b_ref[...]).reshape(TB, Bp, Gp)

        whh = whh_ref[...]                          # (H, Gp) bf16: tiny, hoisted

        def step(i, carry):
            h, c = carry
            loc = jnp.where(d == 1, TB - 1 - i, i)
            gates = xp_scr[loc] + jnp.dot(h.astype(jnp.bfloat16), whh,
                                          preferred_element_type=jnp.float32)
            h_new, c_new = _cell_math(gates, h, c, H)
            if needs_mask:                          # mask padded tail timesteps
                m = ((t0 + loc) < T_real).astype(jnp.float32)
                h_new = h + m * (h_new - h)
                c_new = c + m * (c_new - c)
            out_ref[loc] = h_new.astype(out_dtype)
            return (h_new, c_new)

        h, c = jax.lax.fori_loop(0, TB, step, (h_scr[...], c_scr[...]),
                                 unroll=unroll)
        h_scr[...] = h
        c_scr[...] = c

    return kernel


def lstm_seq_layer(x, wih, whh, b, *, n_dir, TB, H, T_real):
    """x: (NDI, T_pad, Bp, Fp) bf16; weights stacked over output direction.
       Returns (n_dir, T_pad, Bp, H) bf16 hidden sequences."""
    NDI, T_pad, Bp, Fp = x.shape
    n_tb = T_pad // TB
    Gp = whh.shape[-1]
    unroll = _pick_unroll(TB)

    def tblk(d, tb):
        return tb + d * (n_tb - 1 - 2 * tb)

    in_specs = [
        pl.BlockSpec((NDI, TB, Bp, Fp), lambda d, tb: (0, tblk(d, tb), 0, 0)),
        pl.BlockSpec((None, NDI, Fp, Gp), lambda d, tb: (d, 0, 0, 0)),
        pl.BlockSpec((None, H, Gp), lambda d, tb: (d, 0, 0)),
        pl.BlockSpec((None, 1, Gp), lambda d, tb: (d, 0, 0)),
    ]
    out_spec = pl.BlockSpec((None, TB, Bp, H), lambda d, tb: (d, tblk(d, tb), 0, 0))
    out_shape = jax.ShapeDtypeStruct((n_dir, T_pad, Bp, H), jnp.bfloat16)

    scratch = [pltpu.VMEM((TB, Bp, Gp), jnp.float32),    # per-block pre-activations
               pltpu.VMEM((Bp, H), jnp.float32),         # h (persists across blocks)
               pltpu.VMEM((Bp, H), jnp.float32)]         # c

    est = (2 * NDI * TB * Bp * Fp * 2 + 2 * TB * Bp * H * 2
           + _nbytes(wih) + _nbytes(whh) + _nbytes(b)
           + TB * Bp * Gp * 4 + 2 * Bp * H * 4)

    kernel = _make_seq_kernel(T_real=T_real, T_pad=T_pad, TB=TB, H=H, NDI=NDI,
                              Fp=Fp, Gp=Gp, Bp=Bp, unroll=unroll,
                              out_dtype=jnp.bfloat16)
    return pl.pallas_call(
        kernel,
        out_shape=out_shape,
        grid_spec=pltpu.PrefetchScalarGridSpec(
            num_scalar_prefetch=0,
            grid=(n_dir, n_tb),
            in_specs=in_specs,
            out_specs=out_spec,
            scratch_shapes=scratch),
        compiler_params=pltpu.CompilerParams(
            dimension_semantics=("parallel", "arbitrary"),
            vmem_limit_bytes=_vmem_limit(est)),
    )(x, wih, whh, b)


# ----------------------- last layer fused with Linear --------------------------
def _make_fc_kernel(*, bidirectional, T_real, T_pad, TB, H, NDI, Fp, Gp, Bp, unroll):
    needs_mask = T_pad != T_real

    def kernel(*refs):
        if bidirectional:
            (x_ref, wih_ref, whh_ref, b_ref, wihr_ref, br_ref,
             fcw_ref, fcb_ref, out_ref, xp_scr, h_scr, c_scr) = refs
        else:
            (x_ref, wih_ref, whh_ref, b_ref, fcw_ref, fcb_ref,
             out_ref, xp_scr, h_scr, c_scr) = refs

        tb = pl.program_id(0)
        n_tb = pl.num_programs(0)
        t0 = tb * TB

        @pl.when(tb == 0)
        def _():
            h_scr[...] = jnp.zeros_like(h_scr)
            c_scr[...] = jnp.zeros_like(c_scr)

        xp = None
        for di in range(NDI):
            p = jnp.dot(x_ref[di].reshape(TB * Bp, Fp), wih_ref[di],
                        preferred_element_type=jnp.float32)
            xp = p if xp is None else xp + p
        xp_scr[...] = (xp + b_ref[...]).reshape(TB, Bp, Gp)

        whh = whh_ref[...]

        def step(i, carry):
            h, c = carry
            gates = xp_scr[i] + jnp.dot(h.astype(jnp.bfloat16), whh,
                                        preferred_element_type=jnp.float32)
            h_new, c_new = _cell_math(gates, h, c, H)
            if needs_mask:
                m = ((t0 + i) < T_real).astype(jnp.float32)
                h_new = h + m * (h_new - h)
                c_new = c + m * (c_new - c)
            return (h_new, c_new)

        h, c = jax.lax.fori_loop(0, TB, step, (h_scr[...], c_scr[...]),
                                 unroll=unroll)
        h_scr[...] = h
        c_scr[...] = c

        @pl.when(tb == n_tb - 1)
        def _():
            if bidirectional:
                out = jnp.dot(h.astype(jnp.bfloat16), fcw_ref[0],
                              preferred_element_type=jnp.float32)
                # Reverse direction of the LAST layer: out[:, -1, H:] is exactly
                # one step on x[T-1] from zero state (no W_hh term needed).
                loc = (T_real - 1) - t0
                gr = None
                for di in range(NDI):
                    p = jnp.dot(x_ref[di, loc], wihr_ref[di],
                                preferred_element_type=jnp.float32)
                    gr = p if gr is None else gr + p
                gr = gr + br_ref[...]
                h3 = 3 * H
                sig = jax.nn.sigmoid(gr[:, :h3])
                g_g = jnp.tanh(gr[:, h3:4 * H])
                c_r = sig[:, :H] * g_g
                h_r = sig[:, 2 * H:h3] * jnp.tanh(c_r)
                out = out + jnp.dot(h_r.astype(jnp.bfloat16), fcw_ref[1],
                                    preferred_element_type=jnp.float32)
            else:
                out = jnp.dot(h.astype(jnp.bfloat16), fcw_ref[...],
                              preferred_element_type=jnp.float32)
            out_ref[...] = out + fcb_ref[...]

    return kernel


def lstm_fc_layer(x, wih, whh, b, fcw, fcb, *, TB, H, T_real,
                  wih_r=None, b_r=None):
    """Last LSTM layer fused with the final Linear (and, when bidirectional,
       with the single reverse-direction step that out[:, -1, H:] needs)."""
    NDI, T_pad, Bp, Fp = x.shape
    n_tb = T_pad // TB
    Gp = whh.shape[-1]
    Op = fcw.shape[-1]
    bidir = wih_r is not None
    unroll = _pick_unroll(TB)

    def full(a):
        n = a.ndim
        return pl.BlockSpec(a.shape, lambda tb: (0,) * n)

    in_specs = [pl.BlockSpec((NDI, TB, Bp, Fp), lambda tb: (0, tb, 0, 0)),
                full(wih), full(whh), full(b)]
    args = [x, wih, whh, b]
    if bidir:
        in_specs += [full(wih_r), full(b_r)]
        args += [wih_r, b_r]
    in_specs += [full(fcw), full(fcb)]
    args += [fcw, fcb]

    out_shape = jax.ShapeDtypeStruct((Bp, Op), jnp.float32)
    out_spec = pl.BlockSpec((Bp, Op), lambda tb: (0, 0))

    scratch = [pltpu.VMEM((TB, Bp, Gp), jnp.float32),
               pltpu.VMEM((Bp, H), jnp.float32),
               pltpu.VMEM((Bp, H), jnp.float32)]

    est = (2 * NDI * TB * Bp * Fp * 2 + Bp * Op * 4
           + sum(_nbytes(a) for a in args[1:])
           + TB * Bp * Gp * 4 + 2 * Bp * H * 4)

    kernel = _make_fc_kernel(bidirectional=bidir, T_real=T_real, T_pad=T_pad,
                             TB=TB, H=H, NDI=NDI, Fp=Fp, Gp=Gp, Bp=Bp,
                             unroll=unroll)
    return pl.pallas_call(
        kernel,
        out_shape=out_shape,
        grid_spec=pltpu.PrefetchScalarGridSpec(
            num_scalar_prefetch=0,
            grid=(n_tb,),
            in_specs=in_specs,
            out_specs=out_spec,
            scratch_shapes=scratch),
        compiler_params=pltpu.CompilerParams(
            dimension_semantics=("arbitrary",),
            vmem_limit_bytes=_vmem_limit(est)),
    )(*args)


# ----------------------------- NOELSTM forward (Pallas) ------------------------
def noel_lstm_forward(x_btf, params, num_layers, bidirectional, time_block=None):
    """x_btf: (B, T, input_size) batch-first (like PyTorch). -> (B, output_size)."""
    B, T, F = x_btf.shape
    H = params["lstm_l0"][1].shape[1]            # w_hh: (4H, H)
    O = params["fc_weight"].shape[0]
    n_dir = 2 if bidirectional else 1

    Bp = _round_up(B, 8)
    Gp = _round_up(4 * H, 128)                   # packed gate axis (i|f|o|g) + pad
    Op = _round_up(O, 128)
    TB = min(time_block if time_block is not None else 256, T)
    n_tb = _cdiv(T, TB)
    T_pad = n_tb * TB

    # batch-first -> time-major; pad batch (sublanes) and time (block multiple);
    # inter-layer activations are bf16 (they only feed bf16 MXU operands).
    x = jnp.swapaxes(jnp.asarray(x_btf, jnp.float32), 0, 1)     # (T, B, F)
    x = jnp.pad(x, ((0, T_pad - T), (0, Bp - B), (0, 0)))
    x = x.astype(jnp.bfloat16)[None]                            # (1, T_pad, Bp, F)

    suffixes = ("", "_reverse") if bidirectional else ("",)
    fcw, fcb = _prep_fc(params["fc_weight"], params["fc_bias"],
                        H=H, n_dir=n_dir, Op=Op)

    for layer in range(num_layers):
        last = layer == num_layers - 1
        n_in_dir = 1 if layer == 0 else n_dir
        f_in = F if layer == 0 else H
        pw = [_prep_lstm(*params[f"lstm_l{layer}{s}"], H=H, Gp=Gp,
                         n_in_dir=n_in_dir, f_in=f_in) for s in suffixes]

        if not last:
            wih_all = jnp.stack([p[0] for p in pw])     # (n_dir, NDI, f_in, Gp)
            whh_all = jnp.stack([p[1] for p in pw])     # (n_dir, H, Gp)
            b_all = jnp.stack([p[2] for p in pw])       # (n_dir, 1, Gp)
            x = lstm_seq_layer(x, wih_all, whh_all, b_all,
                               n_dir=n_dir, TB=TB, H=H, T_real=T)
            continue

        if not bidirectional:
            wih, whh, b = pw[0]
            out = lstm_fc_layer(x, wih, whh, b, fcw, fcb,
                                TB=TB, H=H, T_real=T)
        else:
            wih_f, whh_f, b_f = pw[0]
            wih_r, _, b_r = pw[1]
            out = lstm_fc_layer(x, wih_f, whh_f, b_f, fcw, fcb,
                                TB=TB, H=H, T_real=T,
                                wih_r=wih_r, b_r=b_r)
        return out[:B, :O]


# ----------------------------- Pure-JAX reference ------------------------------
def _lstm_layer_ref(x_tbf, w_ih, w_hh, b_ih, b_hh):
    H = w_hh.shape[1]
    B = x_tbf.shape[1]

    def step(carry, x_t):
        h, c = carry
        gates = x_t @ w_ih.T + h @ w_hh.T + b_ih + b_hh
        i, f, g, o = jnp.split(gates, 4, axis=-1)
        i, f, o = jax.nn.sigmoid(i), jax.nn.sigmoid(f), jax.nn.sigmoid(o)
        g = jnp.tanh(g)
        c = f * c + i * g
        h = o * jnp.tanh(c)
        return (h, c), h

    h0 = jnp.zeros((B, H), jnp.float32)
    _, hs = jax.lax.scan(step, (h0, h0), x_tbf)
    return hs


def noel_lstm_ref(x_btf, params, num_layers, bidirectional):
    suffixes = ("", "_reverse") if bidirectional else ("",)
    h = jnp.swapaxes(x_btf.astype(jnp.float32), 0, 1)
    for layer in range(num_layers):
        outs = []
        for d, sfx in enumerate(suffixes):
            w_ih, w_hh, b_ih, b_hh = params[f"lstm_l{layer}{sfx}"]
            inp = h if d == 0 else h[::-1]
            o = _lstm_layer_ref(inp, w_ih, w_hh, b_ih, b_hh)
            if d == 1:
                o = o[::-1]
            outs.append(o)
        h = jnp.concatenate(outs, axis=-1) if len(outs) > 1 else outs[0]
    last = h[-1]
    return last @ params["fc_weight"].T + params["fc_bias"]


# ----------------------------- Parameter init ----------------------------------
def init_params(key, input_size, hidden_size, num_layers, output_size,
                bidirectional):
    """Deterministic init matching PyTorch shapes (uniform(-1/sqrt(H), 1/sqrt(H)))."""
    params = {}
    dir_factor = 2 if bidirectional else 1
    k = 1.0 / math.sqrt(hidden_size)
    suffixes = ("", "_reverse") if bidirectional else ("",)
    for layer in range(num_layers):
        in_sz = input_size if layer == 0 else hidden_size * dir_factor
        for sfx in suffixes:
            key, k1, k2, k3, k4 = jax.random.split(key, 5)
            w_ih = jax.random.uniform(k1, (4 * hidden_size, in_sz),
                                      jnp.float32, -k, k)
            w_hh = jax.random.uniform(k2, (4 * hidden_size, hidden_size),
                                      jnp.float32, -k, k)
            b_ih = jax.random.uniform(k3, (4 * hidden_size,), jnp.float32, -k, k)
            b_hh = jax.random.uniform(k4, (4 * hidden_size,), jnp.float32, -k, k)
            params[f"lstm_l{layer}{sfx}"] = (w_ih, w_hh, b_ih, b_hh)
    kf = 1.0 / math.sqrt(hidden_size * dir_factor)
    key, k1, k2 = jax.random.split(key, 3)
    params["fc_weight"] = jax.random.uniform(
        k1, (output_size, hidden_size * dir_factor), jnp.float32, -kf, kf)
    params["fc_bias"] = jax.random.uniform(
        k2, (output_size,), jnp.float32, -kf, kf)
    return params


# ----------------------------------- main ---------------------------------------
if __name__ == "__main__":
    input_size, hidden_size, num_layers, output_size = 16, 32, 2, 4

    root = jax.random.PRNGKey(0)
    kx1, kx2, kp_uni, kp_bi = jax.random.split(root, 4)

    # (B, T, time_block): the first config matches the module spec; the second
    # exercises the time-chunked grid (3 blocks of 16, with a partial tail).
    configs = [(2, 8, None, kx1), (2, 40, 16, kx2)]

    for bidirectional, kp in ((False, kp_uni), (True, kp_bi)):
        params = init_params(kp, input_size, hidden_size, num_layers,
                             output_size, bidirectional)
        for B, T, tb, kxi in configs:
            x = jax.random.normal(kxi, (B, T, input_size), jnp.float32)

            out = jax.block_until_ready(
                noel_lstm_forward(x, params, num_layers, bidirectional,
                                  time_block=tb))
            ref = jax.block_until_ready(
                noel_lstm_ref(x, params, num_layers, bidirectional))

            # bf16 MXU inputs with f32 accumulation -> looser tolerance than
            # a pure-f32 comparison.
            np.testing.assert_allclose(np.asarray(out), np.asarray(ref),
                                       rtol=3e-2, atol=3e-2)
            assert out.shape == (B, output_size)

    print("KERNEL_OK")
</pallas_src>

<mosaic_0001>
module attributes {stable_mosaic.version = 11 : i64} {
  func.func @kernel(%arg0: i32, %arg1: i32, %arg2: memref<1x8x8x16xbf16, #tpu.memory_space<vmem>>, %arg3: memref<1x1x16x128xbf16, #tpu.memory_space<vmem>>, %arg4: memref<1x32x128xbf16, #tpu.memory_space<vmem>>, %arg5: memref<1x1x128xf32, #tpu.memory_space<vmem>>, %arg6: memref<1x8x8x32xbf16, #tpu.memory_space<vmem>>, %arg7: memref<8x8x128xf32, #tpu.memory_space<vmem>>, %arg8: memref<8x32xf32, #tpu.memory_space<vmem>>, %arg9: memref<8x32xf32, #tpu.memory_space<vmem>>) attributes {dimension_semantics = [#tpu.dimension_semantics<parallel>, #tpu.dimension_semantics<arbitrary>], iteration_bounds = array<i64: 1, 1>, scalar_prefetch = 0 : i64, scratch_operands = 3 : i64, tpu.core_type = #tpu.core_type<tc>, window_params = [{transform_indices = @transform_0, window_bounds = array<i64: 1, 8, 8, 16>}, {transform_indices = @transform_1, window_bounds = array<i64: 1, 1, 16, 128>}, {transform_indices = @transform_2, window_bounds = array<i64: 1, 32, 128>}, {transform_indices = @transform_3, window_bounds = array<i64: 1, 1, 128>}, {transform_indices = @transform_4, window_bounds = array<i64: 1, 8, 8, 32>}]} {
    %c0_i32 = arith.constant 0 : i32
    %0 = arith.cmpi eq, %arg1, %c0_i32 : i32
    %1 = arith.extui %0 : i1 to i32
    %c0_i32_0 = arith.constant 0 : i32
    %2 = arith.cmpi ne, %1, %c0_i32_0 : i32
    scf.if %2 {
      %cst_98 = arith.constant 0.000000e+00 : f32
      %261 = vector.broadcast %cst_98 : f32 to vector<8x32xf32>
      %c0_99 = arith.constant 0 : index
      %c0_100 = arith.constant 0 : index
      %262 = vector.load %arg8[%c0_99, %c0_100] : memref<8x32xf32, #tpu.memory_space<vmem>>, vector<8x32xf32>
      tpu.vector_store %arg8[%c0_99, %c0_100], %261 {strides = array<i32>} : memref<8x32xf32, #tpu.memory_space<vmem>>, vector<8x32xf32>,
      %cst_101 = arith.constant 0.000000e+00 : f32
      %263 = vector.broadcast %cst_101 : f32 to vector<8x32xf32>
      %c0_102 = arith.constant 0 : index
      %c0_103 = arith.constant 0 : index
      %264 = vector.load %arg9[%c0_102, %c0_103] : memref<8x32xf32, #tpu.memory_space<vmem>>, vector<8x32xf32>
      tpu.vector_store %arg9[%c0_102, %c0_103], %263 {strides = array<i32>} : memref<8x32xf32, #tpu.memory_space<vmem>>, vector<8x32xf32>,
    } else {
    }
    %c0 = arith.constant 0 : index
    %c0_1 = arith.constant 0 : index
    %c0_2 = arith.constant 0 : index
    %c0_3 = arith.constant 0 : index
    %3 = vector.load %arg2[%c0, %c0_1, %c0_2, %c0_3] : memref<1x8x8x16xbf16, #tpu.memory_space<vmem>>, vector<1x8x8x16xbf16>
    %4 = vector.shape_cast %3 : vector<1x8x8x16xbf16> to vector<8x8x16xbf16>
    %5 = vector.shape_cast %4 : vector<8x8x16xbf16> to vector<64x16xbf16>
    %c0_4 = arith.constant 0 : index
    %c0_5 = arith.constant 0 : index
    %c0_6 = arith.constant 0 : index
    %c0_7 = arith.constant 0 : index
    %6 = vector.load %arg3[%c0_4, %c0_5, %c0_6, %c0_7] : memref<1x1x16x128xbf16, #tpu.memory_space<vmem>>, vector<1x1x16x128xbf16>
    %7 = vector.shape_cast %6 : vector<1x1x16x128xbf16> to vector<16x128xbf16>
    %cst = arith.constant dense<0.000000e+00> : vector<64x128xf32>
    %8 = tpu.matmul %5, %7, %cst {dimension_numbers = #tpu.dot_dimension_numbers<[1], [0], [0], [1], [0, 0, 1, 1], [], []>} : vector<64x16xbf16>, vector<16x128xbf16>, vector<64x128xf32> -> vector<64x128xf32>
    %c0_8 = arith.constant 0 : index
    %c0_9 = arith.constant 0 : index
    %c0_10 = arith.constant 0 : index
    %9 = vector.load %arg5[%c0_8, %c0_9, %c0_10] : memref<1x1x128xf32, #tpu.memory_space<vmem>>, vector<1x1x128xf32>
    %10 = vector.shape_cast %9 : vector<1x1x128xf32> to vector<1x128xf32>
    %11 = vector.broadcast %10 : vector<1x128xf32> to vector<64x128xf32>
    %12 = arith.addf %8, %11 : vector<64x128xf32>
    %13 = vector.shape_cast %12 : vector<64x128xf32> to vector<8x8x128xf32>
    %c0_11 = arith.constant 0 : index
    %c0_12 = arith.constant 0 : index
    %c0_13 = arith.constant 0 : index
    %14 = vector.load %arg7[%c0_11, %c0_12, %c0_13] : memref<8x8x128xf32, #tpu.memory_space<vmem>>, vector<8x8x128xf32>
    tpu.vector_store %arg7[%c0_11, %c0_12, %c0_13], %13 {strides = array<i32>} : memref<8x8x128xf32, #tpu.memory_space<vmem>>, vector<8x8x128xf32>,
    %c0_14 = arith.constant 0 : index
    %c0_15 = arith.constant 0 : index
    %c0_16 = arith.constant 0 : index
    %15 = vector.load %arg4[%c0_14, %c0_15, %c0_16] : memref<1x32x128xbf16, #tpu.memory_space<vmem>>, vector<1x32x128xbf16>
    %16 = vector.shape_cast %15 : vector<1x32x128xbf16> to vector<32x128xbf16>
    %c0_17 = arith.constant 0 : index
    %c0_18 = arith.constant 0 : index
    %17 = vector.load %arg8[%c0_17, %c0_18] : memref<8x32xf32, #tpu.memory_space<vmem>>, vector<8x32xf32>
    %c0_19 = arith.constant 0 : index
    %c0_20 = arith.constant 0 : index
    %18 = vector.load %arg9[%c0_19, %c0_20] : memref<8x32xf32, #tpu.memory_space<vmem>>, vector<8x32xf32>
    %c0_i32_21 = arith.constant 0 : i32
    %c1_i32 = arith.constant 1 : i32
    %19 = arith.cmpi eq, %arg0, %c1_i32 : i32
    %c7_i32 = arith.constant 7 : i32
    %20 = arith.subi %c7_i32, %c0_i32_21 : i32
    %21 = arith.select %19, %20, %c0_i32_21 : i32
    %22 = arith.index_cast %21 : i32 to index
    %c0_22 = arith.constant 0 : index
    %c0_23 = arith.constant 0 : index
    %23 = vector.load %arg7[%22, %c0_22, %c0_23] : memref<8x8x128xf32, #tpu.memory_space<vmem>>, vector<1x8x128xf32>
    %24 = vector.shape_cast %23 : vector<1x8x128xf32> to vector<8x128xf32>
    %25 = arith.truncf %17 : vector<8x32xf32> to vector<8x32xbf16>
    %cst_24 = arith.constant dense<0.000000e+00> : vector<8x128xf32>
    %26 = tpu.matmul %25, %16, %cst_24 {dimension_numbers = #tpu.dot_dimension_numbers<[1], [0], [0], [1], [0, 0, 1, 1], [], []>} : vector<8x32xbf16>, vector<32x128xbf16>, vector<8x128xf32> -> vector<8x128xf32>
    %27 = arith.addf %24, %26 : vector<8x128xf32>
    %28 = vector.extract_strided_slice %27 {offsets = [0, 0], sizes = [8, 96], strides = [1, 1]} : vector<8x128xf32> to vector<8x96xf32>
    %29 = arith.negf %28 : vector<8x96xf32>
    %30 = math.exp %29 : vector<8x96xf32>
    %cst_25 = arith.constant 1.000000e+00 : f32
    %31 = vector.broadcast %cst_25 : f32 to vector<8x96xf32>
    %32 = arith.addf %31, %30 : vector<8x96xf32>
    %33 = arith.divf %31, %32 : vector<8x96xf32>
    %34 = vector.extract_strided_slice %27 {offsets = [0, 96], sizes = [8, 32], strides = [1, 1]} : vector<8x128xf32> to vector<8x32xf32>
    %35 = math.tanh %34 : vector<8x32xf32>
    %36 = vector.extract_strided_slice %33 {offsets = [0, 32], sizes = [8, 32], strides = [1, 1]} : vector<8x96xf32> to vector<8x32xf32>
    %37 = arith.mulf %36, %18 : vector<8x32xf32>
    %38 = vector.extract_strided_slice %33 {offsets = [0, 0], sizes = [8, 32], strides = [1, 1]} : vector<8x96xf32> to vector<8x32xf32>
    %39 = arith.mulf %38, %35 : vector<8x32xf32>
    %40 = arith.addf %37, %39 : vector<8x32xf32>
    %41 = vector.extract_strided_slice %33 {offsets = [0, 64], sizes = [8, 32], strides = [1, 1]} : vector<8x96xf32> to vector<8x32xf32>
    %42 = math.tanh %40 : vector<8x32xf32>
    %43 = arith.mulf %41, %42 : vector<8x32xf32>
    %44 = arith.truncf %43 : vector<8x32xf32> to vector<8x32xbf16>
    %c0_26 = arith.constant 0 : index
    %45 = arith.index_cast %21 : i32 to index
    %c0_27 = arith.constant 0 : index
    %c0_28 = arith.constant 0 : index
    %46 = vector.load %arg6[%c0_26, %45, %c0_27, %c0_28] : memref<1x8x8x32xbf16, #tpu.memory_space<vmem>>, vector<1x1x8x32xbf16>
    %47 = vector.shape_cast %46 : vector<1x1x8x32xbf16> to vector<8x32xbf16>
    %48 = vector.shape_cast %44 : vector<8x32xbf16> to vector<1x1x8x32xbf16>
    tpu.vector_store %arg6[%c0_26, %45, %c0_27, %c0_28], %48 {strides = array<i32>} : memref<1x8x8x32xbf16, #tpu.memory_space<vmem>>, vector<1x1x8x32xbf16>,
    %c1_i32_29 = arith.constant 1 : i32
    %c1_i32_30 = arith.constant 1 : i32
    %49 = arith.cmpi eq, %arg0, %c1_i32_30 : i32
    %c7_i32_31 = arith.constant 7 : i32
    %50 = arith.subi %c7_i32_31, %c1_i32_29 : i32
    %51 = arith.select %49, %50, %c1_i32_29 : i32
    %52 = arith.index_cast %51 : i32 to index
    %c0_32 = arith.constant 0 : index
    %c0_33 = arith.constant 0 : index
    %53 = vector.load %arg7[%52, %c0_32, %c0_33] : memref<8x8x128xf32, #tpu.memory_space<vmem>>, vector<1x8x128xf32>
    %54 = vector.shape_cast %53 : vector<1x8x128xf32> to vector<8x128xf32>
    %55 = arith.truncf %43 : vector<8x32xf32> to vector<8x32xbf16>
    %cst_34 = arith.constant dense<0.000000e+00> : vector<8x128xf32>
    %56 = tpu.matmul %55, %16, %cst_34 {dimension_numbers = #tpu.dot_dimension_numbers<[1], [0], [0], [1], [0, 0, 1, 1], [], []>} : vector<8x32xbf16>, vector<32x128xbf16>, vector<8x128xf32> -> vector<8x128xf32>
    %57 = arith.addf %54, %56 : vector<8x128xf32>
    %58 = vector.extract_strided_slice %57 {offsets = [0, 0], sizes = [8, 96], strides = [1, 1]} : vector<8x128xf32> to vector<8x96xf32>
    %59 = arith.negf %58 : vector<8x96xf32>
    %60 = math.exp %59 : vector<8x96xf32>
    %cst_35 = arith.constant 1.000000e+00 : f32
    %61 = vector.broadcast %cst_35 : f32 to vector<8x96xf32>
    %62 = arith.addf %61, %60 : vector<8x96xf32>
    %63 = arith.divf %61, %62 : vector<8x96xf32>
    %64 = vector.extract_strided_slice %57 {offsets = [0, 96], sizes = [8, 32], strides = [1, 1]} : vector<8x128xf32> to vector<8x32xf32>
    %65 = math.tanh %64 : vector<8x32xf32>
    %66 = vector.extract_strided_slice %63 {offsets = [0, 32], sizes = [8, 32], strides = [1, 1]} : vector<8x96xf32> to vector<8x32xf32>
    %67 = arith.mulf %66, %40 : vector<8x32xf32>
    %68 = vector.extract_strided_slice %63 {offsets = [0, 0], sizes = [8, 32], strides = [1, 1]} : vector<8x96xf32> to vector<8x32xf32>
    %69 = arith.mulf %68, %65 : vector<8x32xf32>
    %70 = arith.addf %67, %69 : vector<8x32xf32>
    %71 = vector.extract_strided_slice %63 {offsets = [0, 64], sizes = [8, 32], strides = [1, 1]} : vector<8x96xf32> to vector<8x32xf32>
    %72 = math.tanh %70 : vector<8x32xf32>
    %73 = arith.mulf %71, %72 : vector<8x32xf32>
    %74 = arith.truncf %73 : vector<8x32xf32> to vector<8x32xbf16>
    %c0_36 = arith.constant 0 : index
    %75 = arith.index_cast %51 : i32 to index
    %c0_37 = arith.constant 0 : index
    %c0_38 = arith.constant 0 : index
    %76 = vector.load %arg6[%c0_36, %75, %c0_37, %c0_38] : memref<1x8x8x32xbf16, #tpu.memory_space<vmem>>, vector<1x1x8x32xbf16>
    %77 = vector.shape_cast %76 : vector<1x1x8x32xbf16> to vector<8x32xbf16>
    %78 = vector.shape_cast %74 : vector<8x32xbf16> to vector<1x1x8x32xbf16>
    tpu.vector_store %arg6[%c0_36, %75, %c0_37, %c0_38], %78 {strides = array<i32>} : memref<1x8x8x32xbf16, #tpu.memory_space<vmem>>, vector<1x1x8x32xbf16>,
    %c2_i32 = arith.constant 2 : i32
    %c1_i32_39 = arith.constant 1 : i32
    %79 = arith.cmpi eq, %arg0, %c1_i32_39 : i32
    %c7_i32_40 = arith.constant 7 : i32
    %80 = arith.subi %c7_i32_40, %c2_i32 : i32
    %81 = arith.select %79, %80, %c2_i32 : i32
    %82 = arith.index_cast %81 : i32 to index
    %c0_41 = arith.constant 0 : index
    %c0_42 = arith.constant 0 : index
    %83 = vector.load %arg7[%82, %c0_41, %c0_42] : memref<8x8x128xf32, #tpu.memory_space<vmem>>, vector<1x8x128xf32>
    %84 = vector.shape_cast %83 : vector<1x8x128xf32> to vector<8x128xf32>
    %85 = arith.truncf %73 : vector<8x32xf32> to vector<8x32xbf16>
    %cst_43 = arith.constant dense<0.000000e+00> : vector<8x128xf32>
    %86 = tpu.matmul %85, %16, %cst_43 {dimension_numbers = #tpu.dot_dimension_numbers<[1], [0], [0], [1], [0, 0, 1, 1], [], []>} : vector<8x32xbf16>, vector<32x128xbf16>, vector<8x128xf32> -> vector<8x128xf32>
    %87 = arith.addf %84, %86 : vector<8x128xf32>
    %88 = vector.extract_strided_slice %87 {offsets = [0, 0], sizes = [8, 96], strides = [1, 1]} : vector<8x128xf32> to vector<8x96xf32>
    %89 = arith.negf %88 : vector<8x96xf32>
    %90 = math.exp %89 : vector<8x96xf32>
    %cst_44 = arith.constant 1.000000e+00 : f32
    %91 = vector.broadcast %cst_44 : f32 to vector<8x96xf32>
    %92 = arith.addf %91, %90 : vector<8x96xf32>
    %93 = arith.divf %91, %92 : vector<8x96xf32>
    %94 = vector.extract_strided_slice %87 {offsets = [0, 96], sizes = [8, 32], strides = [1, 1]} : vector<8x128xf32> to vector<8x32xf32>
    %95 = math.tanh %94 : vector<8x32xf32>
    %96 = vector.extract_strided_slice %93 {offsets = [0, 32], sizes = [8, 32], strides = [1, 1]} : vector<8x96xf32> to vector<8x32xf32>
    %97 = arith.mulf %96, %70 : vector<8x32xf32>
    %98 = vector.extract_strided_slice %93 {offsets = [0, 0], sizes = [8, 32], strides = [1, 1]} : vector<8x96xf32> to vector<8x32xf32>
    %99 = arith.mulf %98, %95 : vector<8x32xf32>
    %100 = arith.addf %97, %99 : vector<8x32xf32>
    %101 = vector.extract_strided_slice %93 {offsets = [0, 64], sizes = [8, 32], strides = [1, 1]} : vector<8x96xf32> to vector<8x32xf32>
    %102 = math.tanh %100 : vector<8x32xf32>
    %103 = arith.mulf %101, %102 : vector<8x32xf32>
    %104 = arith.truncf %103 : vector<8x32xf32> to vector<8x32xbf16>
    %c0_45 = arith.constant 0 : index
    %105 = arith.index_cast %81 : i32 to index
    %c0_46 = arith.constant 0 : index
    %c0_47 = arith.constant 0 : index
    %106 = vector.load %arg6[%c0_45, %105, %c0_46, %c0_47] : memref<1x8x8x32xbf16, #tpu.memory_space<vmem>>, vector<1x1x8x32xbf16>
    %107 = vector.shape_cast %106 : vector<1x1x8x32xbf16> to vector<8x32xbf16>
    %108 = vector.shape_cast %104 : vector<8x32xbf16> to vector<1x1x8x32xbf16>
    tpu.vector_store %arg6[%c0_45, %105, %c0_46, %c0_47], %108 {strides = array<i32>} : memref<1x8x8x32xbf16, #tpu.memory_space<vmem>>, vector<1x1x8x32xbf16>,
    %c3_i32 = arith.constant 3 : i32
    %c1_i32_48 = arith.constant 1 : i32
    %109 = arith.cmpi eq, %arg0, %c1_i32_48 : i32
    %c7_i32_49 = arith.constant 7 : i32
    %110 = arith.subi %c7_i32_49, %c3_i32 : i32
    %111 = arith.select %109, %110, %c3_i32 : i32
    %112 = arith.index_cast %111 : i32 to index
    %c0_50 = arith.constant 0 : index
    %c0_51 = arith.constant 0 : index
    %113 = vector.load %arg7[%112, %c0_50, %c0_51] : memref<8x8x128xf32, #tpu.memory_space<vmem>>, vector<1x8x128xf32>
    %114 = vector.shape_cast %113 : vector<1x8x128xf32> to vector<8x128xf32>
    %115 = arith.truncf %103 : vector<8x32xf32> to vector<8x32xbf16>
    %cst_52 = arith.constant dense<0.000000e+00> : vector<8x128xf32>
    %116 = tpu.matmul %115, %16, %cst_52 {dimension_numbers = #tpu.dot_dimension_numbers<[1], [0], [0], [1], [0, 0, 1, 1], [], []>} : vector<8x32xbf16>, vector<32x128xbf16>, vector<8x128xf32> -> vector<8x128xf32>
    %117 = arith.addf %114, %116 : vector<8x128xf32>
    %118 = vector.extract_strided_slice %117 {offsets = [0, 0], sizes = [8, 96], strides = [1, 1]} : vector<8x128xf32> to vector<8x96xf32>
    %119 = arith.negf %118 : vector<8x96xf32>
    %120 = math.exp %119 : vector<8x96xf32>
    %cst_53 = arith.constant 1.000000e+00 : f32
    %121 = vector.broadcast %cst_53 : f32 to vector<8x96xf32>
    %122 = arith.addf %121, %120 : vector<8x96xf32>
    %123 = arith.divf %121, %122 : vector<8x96xf32>
    %124 = vector.extract_strided_slice %117 {offsets = [0, 96], sizes = [8, 32], strides = [1, 1]} : vector<8x128xf32> to vector<8x32xf32>
    %125 = math.tanh %124 : vector<8x32xf32>
    %126 = vector.extract_strided_slice %123 {offsets = [0, 32], sizes = [8, 32], strides = [1, 1]} : vector<8x96xf32> to vector<8x32xf32>
    %127 = arith.mulf %126, %100 : vector<8x32xf32>
    %128 = vector.extract_strided_slice %123 {offsets = [0, 0], sizes = [8, 32], strides = [1, 1]} : vector<8x96xf32> to vector<8x32xf32>
    %129 = arith.mulf %128, %125 : vector<8x32xf32>
    %130 = arith.addf %127, %129 : vector<8x32xf32>
    %131 = vector.extract_strided_slice %123 {offsets = [0, 64], sizes = [8, 32], strides = [1, 1]} : vector<8x96xf32> to vector<8x32xf32>
    %132 = math.tanh %130 : vector<8x32xf32>
    %133 = arith.mulf %131, %132 : vector<8x32xf32>
    %134 = arith.truncf %133 : vector<8x32xf32> to vector<8x32xbf16>
    %c0_54 = arith.constant 0 : index
    %135 = arith.index_cast %111 : i32 to index
    %c0_55 = arith.constant 0 : index
    %c0_56 = arith.constant 0 : index
    %136 = vector.load %arg6[%c0_54, %135, %c0_55, %c0_56] : memref<1x8x8x32xbf16, #tpu.memory_space<vmem>>, vector<1x1x8x32xbf16>
    %137 = vector.shape_cast %136 : vector<1x1x8x32xbf16> to vector<8x32xbf16>
    %138 = vector.shape_cast %134 : vector<8x32xbf16> to vector<1x1x8x32xbf16>
    tpu.vector_store %arg6[%c0_54, %135, %c0_55, %c0_56], %138 {strides = array<i32>} : memref<1x8x8x32xbf16, #tpu.memory_space<vmem>>, vector<1x1x8x32xbf16>,
    %c4_i32 = arith.constant 4 : i32
    %c1_i32_57 = arith.constant 1 : i32
    %139 = arith.cmpi eq, %arg0, %c1_i32_57 : i32
    %c7_i32_58 = arith.constant 7 : i32
    %140 = arith.subi %c7_i32_58, %c4_i32 : i32
    %141 = arith.select %139, %140, %c4_i32 : i32
    %142 = arith.index_cast %141 : i32 to index
    %c0_59 = arith.constant 0 : index
    %c0_60 = arith.constant 0 : index
    %143 = vector.load %arg7[%142, %c0_59, %c0_60] : memref<8x8x128xf32, #tpu.memory_space<vmem>>, vector<1x8x128xf32>
    %144 = vector.shape_cast %143 : vector<1x8x128xf32> to vector<8x128xf32>
    %145 = arith.truncf %133 : vector<8x32xf32> to vector<8x32xbf16>
    %cst_61 = arith.constant dense<0.000000e+00> : vector<8x128xf32>
    %146 = tpu.matmul %145, %16, %cst_61 {dimension_numbers = #tpu.dot_dimension_numbers<[1], [0], [0], [1], [0, 0, 1, 1], [], []>} : vector<8x32xbf16>, vector<32x128xbf16>, vector<8x128xf32> -> vector<8x128xf32>
    %147 = arith.addf %144, %146 : vector<8x128xf32>
    %148 = vector.extract_strided_slice %147 {offsets = [0, 0], sizes = [8, 96], strides = [1, 1]} : vector<8x128xf32> to vector<8x96xf32>
    %149 = arith.negf %148 : vector<8x96xf32>
    %150 = math.exp %149 : vector<8x96xf32>
    %cst_62 = arith.constant 1.000000e+00 : f32
    %151 = vector.broadcast %cst_62 : f32 to vector<8x96xf32>
    %152 = arith.addf %151, %150 : vector<8x96xf32>
    %153 = arith.divf %151, %152 : vector<8x96xf32>
    %154 = vector.extract_strided_slice %147 {offsets = [0, 96], sizes = [8, 32], strides = [1, 1]} : vector<8x128xf32> to vector<8x32xf32>
    %155 = math.tanh %154 : vector<8x32xf32>
    %156 = vector.extract_strided_slice %153 {offsets = [0, 32], sizes = [8, 32], strides = [1, 1]} : vector<8x96xf32> to vector<8x32xf32>
    %157 = arith.mulf %156, %130 : vector<8x32xf32>
    %158 = vector.extract_strided_slice %153 {offsets = [0, 0], sizes = [8, 32], strides = [1, 1]} : vector<8x96xf32> to vector<8x32xf32>
    %159 = arith.mulf %158, %155 : vector<8x32xf32>
    %160 = arith.addf %157, %159 : vector<8x32xf32>
    %161 = vector.extract_strided_slice %153 {offsets = [0, 64], sizes = [8, 32], strides = [1, 1]} : vector<8x96xf32> to vector<8x32xf32>
    %162 = math.tanh %160 : vector<8x32xf32>
    %163 = arith.mulf %161, %162 : vector<8x32xf32>
    %164 = arith.truncf %163 : vector<8x32xf32> to vector<8x32xbf16>
    %c0_63 = arith.constant 0 : index
    %165 = arith.index_cast %141 : i32 to index
    %c0_64 = arith.constant 0 : index
    %c0_65 = arith.constant 0 : index
    %166 = vector.load %arg6[%c0_63, %165, %c0_64, %c0_65] : memref<1x8x8x32xbf16, #tpu.memory_space<vmem>>, vector<1x1x8x32xbf16>
    %167 = vector.shape_cast %166 : vector<1x1x8x32xbf16> to vector<8x32xbf16>
    %168 = vector.shape_cast %164 : vector<8x32xbf16> to vector<1x1x8x32xbf16>
    tpu.vector_store %arg6[%c0_63, %165, %c0_64, %c0_65], %168 {strides = array<i32>} : memref<1x8x8x32xbf16, #tpu.memory_space<vmem>>, vector<1x1x8x32xbf16>,
    %c5_i32 = arith.constant 5 : i32
    %c1_i32_66 = arith.constant 1 : i32
    %169 = arith.cmpi eq, %arg0, %c1_i32_66 : i32
    %c7_i32_67 = arith.constant 7 : i32
    %170 = arith.subi %c7_i32_67, %c5_i32 : i32
    %171 = arith.select %169, %170, %c5_i32 : i32
    %172 = arith.index_cast %171 : i32 to index
    %c0_68 = arith.constant 0 : index
    %c0_69 = arith.constant 0 : index
    %173 = vector.load %arg7[%172, %c0_68, %c0_69] : memref<8x8x128xf32, #tpu.memory_space<vmem>>, vector<1x8x128xf32>
    %174 = vector.shape_cast %173 : vector<1x8x128xf32> to vector<8x128xf32>
    %175 = arith.truncf %163 : vector<8x32xf32> to vector<8x32xbf16>
    %cst_70 = arith.constant dense<0.000000e+00> : vector<8x128xf32>
    %176 = tpu.matmul %175, %16, %cst_70 {dimension_numbers = #tpu.dot_dimension_numbers<[1], [0], [0], [1], [0, 0, 1, 1], [], []>} : vector<8x32xbf16>, vector<32x128xbf16>, vector<8x128xf32> -> vector<8x128xf32>
    %177 = arith.addf %174, %176 : vector<8x128xf32>
    %178 = vector.extract_strided_slice %177 {offsets = [0, 0], sizes = [8, 96], strides = [1, 1]} : vector<8x128xf32> to vector<8x96xf32>
    %179 = arith.negf %178 : vector<8x96xf32>
    %180 = math.exp %179 : vector<8x96xf32>
    %cst_71 = arith.constant 1.000000e+00 : f32
    %181 = vector.broadcast %cst_71 : f32 to vector<8x96xf32>
    %182 = arith.addf %181, %180 : vector<8x96xf32>
    %183 = arith.divf %181, %182 : vector<8x96xf32>
    %184 = vector.extract_strided_slice %177 {offsets = [0, 96], sizes = [8, 32], strides = [1, 1]} : vector<8x128xf32> to vector<8x32xf32>
    %185 = math.tanh %184 : vector<8x32xf32>
    %186 = vector.extract_strided_slice %183 {offsets = [0, 32], sizes = [8, 32], strides = [1, 1]} : vector<8x96xf32> to vector<8x32xf32>
    %187 = arith.mulf %186, %160 : vector<8x32xf32>
    %188 = vector.extract_strided_slice %183 {offsets = [0, 0], sizes = [8, 32], strides = [1, 1]} : vector<8x96xf32> to vector<8x32xf32>
    %189 = arith.mulf %188, %185 : vector<8x32xf32>
    %190 = arith.addf %187, %189 : vector<8x32xf32>
    %191 = vector.extract_strided_slice %183 {offsets = [0, 64], sizes = [8, 32], strides = [1, 1]} : vector<8x96xf32> to vector<8x32xf32>
    %192 = math.tanh %190 : vector<8x32xf32>
    %193 = arith.mulf %191, %192 : vector<8x32xf32>
    %194 = arith.truncf %193 : vector<8x32xf32> to vector<8x32xbf16>
    %c0_72 = arith.constant 0 : index
    %195 = arith.index_cast %171 : i32 to index
    %c0_73 = arith.constant 0 : index
    %c0_74 = arith.constant 0 : index
    %196 = vector.load %arg6[%c0_72, %195, %c0_73, %c0_74] : memref<1x8x8x32xbf16, #tpu.memory_space<vmem>>, vector<1x1x8x32xbf16>
    %197 = vector.shape_cast %196 : vector<1x1x8x32xbf16> to vector<8x32xbf16>
    %198 = vector.shape_cast %194 : vector<8x32xbf16> to vector<1x1x8x32xbf16>
    tpu.vector_store %arg6[%c0_72, %195, %c0_73, %c0_74], %198 {strides = array<i32>} : memref<1x8x8x32xbf16, #tpu.memory_space<vmem>>, vector<1x1x8x32xbf16>,
    %c6_i32 = arith.constant 6 : i32
    %c1_i32_75 = arith.constant 1 : i32
    %199 = arith.cmpi eq, %arg0, %c1_i32_75 : i32
    %c7_i32_76 = arith.constant 7 : i32
    %200 = arith.subi %c7_i32_76, %c6_i32 : i32
    %201 = arith.select %199, %200, %c6_i32 : i32
    %202 = arith.index_cast %201 : i32 to index
    %c0_77 = arith.constant 0 : index
    %c0_78 = arith.constant 0 : index
    %203 = vector.load %arg7[%202, %c0_77, %c0_78] : memref<8x8x128xf32, #tpu.memory_space<vmem>>, vector<1x8x128xf32>
    %204 = vector.shape_cast %203 : vector<1x8x128xf32> to vector<8x128xf32>
    %205 = arith.truncf %193 : vector<8x32xf32> to vector<8x32xbf16>
    %cst_79 = arith.constant dense<0.000000e+00> : vector<8x128xf32>
    %206 = tpu.matmul %205, %16, %cst_79 {dimension_numbers = #tpu.dot_dimension_numbers<[1], [0], [0], [1], [0, 0, 1, 1], [], []>} : vector<8x32xbf16>, vector<32x128xbf16>, vector<8x128xf32> -> vector<8x128xf32>
    %207 = arith.addf %204, %206 : vector<8x128xf32>
    %208 = vector.extract_strided_slice %207 {offsets = [0, 0], sizes = [8, 96], strides = [1, 1]} : vector<8x128xf32> to vector<8x96xf32>
    %209 = arith.negf %208 : vector<8x96xf32>
    %210 = math.exp %209 : vector<8x96xf32>
    %cst_80 = arith.constant 1.000000e+00 : f32
    %211 = vector.broadcast %cst_80 : f32 to vector<8x96xf32>
    %212 = arith.addf %211, %210 : vector<8x96xf32>
    %213 = arith.divf %211, %212 : vector<8x96xf32>
    %214 = vector.extract_strided_slice %207 {offsets = [0, 96], sizes = [8, 32], strides = [1, 1]} : vector<8x128xf32> to vector<8x32xf32>
    %215 = math.tanh %214 : vector<8x32xf32>
    %216 = vector.extract_strided_slice %213 {offsets = [0, 32], sizes = [8, 32], strides = [1, 1]} : vector<8x96xf32> to vector<8x32xf32>
    %217 = arith.mulf %216, %190 : vector<8x32xf32>
    %218 = vector.extract_strided_slice %213 {offsets = [0, 0], sizes = [8, 32], strides = [1, 1]} : vector<8x96xf32> to vector<8x32xf32>
    %219 = arith.mulf %218, %215 : vector<8x32xf32>
    %220 = arith.addf %217, %219 : vector<8x32xf32>
    %221 = vector.extract_strided_slice %213 {offsets = [0, 64], sizes = [8, 32], strides = [1, 1]} : vector<8x96xf32> to vector<8x32xf32>
    %222 = math.tanh %220 : vector<8x32xf32>
    %223 = arith.mulf %221, %222 : vector<8x32xf32>
    %224 = arith.truncf %223 : vector<8x32xf32> to vector<8x32xbf16>
    %c0_81 = arith.constant 0 : index
    %225 = arith.index_cast %201 : i32 to index
    %c0_82 = arith.constant 0 : index
    %c0_83 = arith.constant 0 : index
    %226 = vector.load %arg6[%c0_81, %225, %c0_82, %c0_83] : memref<1x8x8x32xbf16, #tpu.memory_space<vmem>>, vector<1x1x8x32xbf16>
    %227 = vector.shape_cast %226 : vector<1x1x8x32xbf16> to vector<8x32xbf16>
    %228 = vector.shape_cast %224 : vector<8x32xbf16> to vector<1x1x8x32xbf16>
    tpu.vector_store %arg6[%c0_81, %225, %c0_82, %c0_83], %228 {strides = array<i32>} : memref<1x8x8x32xbf16, #tpu.memory_space<vmem>>, vector<1x1x8x32xbf16>,
    %c7_i32_84 = arith.constant 7 : i32
    %c1_i32_85 = arith.constant 1 : i32
    %229 = arith.cmpi eq, %arg0, %c1_i32_85 : i32
    %c7_i32_86 = arith.constant 7 : i32
    %230 = arith.subi %c7_i32_86, %c7_i32_84 : i32
    %231 = arith.select %229, %230, %c7_i32_84 : i32
    %232 = arith.index_cast %231 : i32 to index
    %c0_87 = arith.constant 0 : index
    %c0_88 = arith.constant 0 : index
    %233 = vector.load %arg7[%232, %c0_87, %c0_88] : memref<8x8x128xf32, #tpu.memory_space<vmem>>, vector<1x8x128xf32>
    %234 = vector.shape_cast %233 : vector<1x8x128xf32> to vector<8x128xf32>
    %235 = arith.truncf %223 : vector<8x32xf32> to vector<8x32xbf16>
    %cst_89 = arith.constant dense<0.000000e+00> : vector<8x128xf32>
    %236 = tpu.matmul %235, %16, %cst_89 {dimension_numbers = #tpu.dot_dimension_numbers<[1], [0], [0], [1], [0, 0, 1, 1], [], []>} : vector<8x32xbf16>, vector<32x128xbf16>, vector<8x128xf32> -> vector<8x128xf32>
    %237 = arith.addf %234, %236 : vector<8x128xf32>
    %238 = vector.extract_strided_slice %237 {offsets = [0, 0], sizes = [8, 96], strides = [1, 1]} : vector<8x128xf32> to vector<8x96xf32>
    %239 = arith.negf %238 : vector<8x96xf32>
    %240 = math.exp %239 : vector<8x96xf32>
    %cst_90 = arith.constant 1.000000e+00 : f32
    %241 = vector.broadcast %cst_90 : f32 to vector<8x96xf32>
    %242 = arith.addf %241, %240 : vector<8x96xf32>
    %243 = arith.divf %241, %242 : vector<8x96xf32>
    %244 = vector.extract_strided_slice %237 {offsets = [0, 96], sizes = [8, 32], strides = [1, 1]} : vector<8x128xf32> to vector<8x32xf32>
    %245 = math.tanh %244 : vector<8x32xf32>
    %246 = vector.extract_strided_slice %243 {offsets = [0, 32], sizes = [8, 32], strides = [1, 1]} : vector<8x96xf32> to vector<8x32xf32>
    %247 = arith.mulf %246, %220 : vector<8x32xf32>
    %248 = vector.extract_strided_slice %243 {offsets = [0, 0], sizes = [8, 32], strides = [1, 1]} : vector<8x96xf32> to vector<8x32xf32>
    %249 = arith.mulf %248, %245 : vector<8x32xf32>
    %250 = arith.addf %247, %249 : vector<8x32xf32>
    %251 = vector.extract_strided_slice %243 {offsets = [0, 64], sizes = [8, 32], strides = [1, 1]} : vector<8x96xf32> to vector<8x32xf32>
    %252 = math.tanh %250 : vector<8x32xf32>
    %253 = arith.mulf %251, %252 : vector<8x32xf32>
    %254 = arith.truncf %253 : vector<8x32xf32> to vector<8x32xbf16>
    %c0_91 = arith.constant 0 : index
    %255 = arith.index_cast %231 : i32 to index
    %c0_92 = arith.constant 0 : index
    %c0_93 = arith.constant 0 : index
    %256 = vector.load %arg6[%c0_91, %255, %c0_92, %c0_93] : memref<1x8x8x32xbf16, #tpu.memory_space<vmem>>, vector<1x1x8x32xbf16>
    %257 = vector.shape_cast %256 : vector<1x1x8x32xbf16> to vector<8x32xbf16>
    %258 = vector.shape_cast %254 : vector<8x32xbf16> to vector<1x1x8x32xbf16>
    tpu.vector_store %arg6[%c0_91, %255, %c0_92, %c0_93], %258 {strides = array<i32>} : memref<1x8x8x32xbf16, #tpu.memory_space<vmem>>, vector<1x1x8x32xbf16>,
    %c8_i32 = arith.constant 8 : i32
    %c0_94 = arith.constant 0 : index
    %c0_95 = arith.constant 0 : index
    %259 = vector.load %arg8[%c0_94, %c0_95] : memref<8x32xf32, #tpu.memory_space<vmem>>, vector<8x32xf32>
    tpu.vector_store %arg8[%c0_94, %c0_95], %253 {strides = array<i32>} : memref<8x32xf32, #tpu.memory_space<vmem>>, vector<8x32xf32>,
    %c0_96 = arith.constant 0 : index
    %c0_97 = arith.constant 0 : index
    %260 = vector.load %arg9[%c0_96, %c0_97] : memref<8x32xf32, #tpu.memory_space<vmem>>, vector<8x32xf32>
    tpu.vector_store %arg9[%c0_96, %c0_97], %250 {strides = array<i32>} : memref<8x32xf32, #tpu.memory_space<vmem>>, vector<8x32xf32>,
    return
  }
  func.func @transform_0(%arg0: i32, %arg1: i32) -> (i32, i32, i32, i32) {
    %c2_i32 = arith.constant 2 : i32
    %0 = arith.muli %c2_i32, %arg1 : i32
    %c0_i32 = arith.constant 0 : i32
    %1 = arith.subi %c0_i32, %0 : i32
    %2 = arith.muli %arg0, %1 : i32
    %3 = arith.addi %arg1, %2 : i32
    %c0_i32_0 = arith.constant 0 : i32
    %c0_i32_1 = arith.constant 0 : i32
    %c0_i32_2 = arith.constant 0 : i32
    %c0_i32_3 = arith.constant 0 : i32
    return %c0_i32_0, %3, %c0_i32_1, %c0_i32_2 : i32, i32, i32, i32
  }
  func.func @transform_1(%arg0: i32, %arg1: i32) -> (i32, i32, i32, i32) {
    %c0_i32 = arith.constant 0 : i32
    %c0_i32_0 = arith.constant 0 : i32
    %c0_i32_1 = arith.constant 0 : i32
    %c0_i32_2 = arith.constant 0 : i32
    return %arg0, %c0_i32, %c0_i32_0, %c0_i32_1 : i32, i32, i32, i32
  }
  func.func @transform_2(%arg0: i32, %arg1: i32) -> (i32, i32, i32) {
    %c0_i32 = arith.constant 0 : i32
    %c0_i32_0 = arith.constant 0 : i32
    %c0_i32_1 = arith.constant 0 : i32
    return %arg0, %c0_i32, %c0_i32_0 : i32, i32, i32
  }
  func.func @transform_3(%arg0: i32, %arg1: i32) -> (i32, i32, i32) {
    %c0_i32 = arith.constant 0 : i32
    %c0_i32_0 = arith.constant 0 : i32
    %c0_i32_1 = arith.constant 0 : i32
    return %arg0, %c0_i32, %c0_i32_0 : i32, i32, i32
  }
  func.func @transform_4(%arg0: i32, %arg1: i32) -> (i32, i32, i32, i32) {
    %c2_i32 = arith.constant 2 : i32
    %0 = arith.muli %c2_i32, %arg1 : i32
    %c0_i32 = arith.constant 0 : i32
    %1 = arith.subi %c0_i32, %0 : i32
    %2 = arith.muli %arg0, %1 : i32
    %3 = arith.addi %arg1, %2 : i32
    %c0_i32_0 = arith.constant 0 : i32
    %c0_i32_1 = arith.constant 0 : i32
    %c0_i32_2 = arith.constant 0 : i32
    return %arg0, %3, %c0_i32_0, %c0_i32_1 : i32, i32, i32, i32
  }
}

</mosaic_0001>

<llo_original>
// kernel: tpu_custom_call.1
$region0: #{tpu_custom_call.1}
  #allocation0 [shape = 'u32[]', space=smem, size = 0x4, offset = 0x4, fixed_abs, tag = 'smem constant byte address 0x4 - core index']
  #allocation1 [shape = 'u32[144,128]{1,0:T(1,128)}', space=vmem, size = 0x12000, scoped, tag = 'internal scratch']
  #allocation2 [shape = 'f32[8,8,128]{2,1,0:T(8,128)}', space=vmem, size = 0x8000, scoped, tag = 'scratch operand']
  #allocation3 [shape = 'f32[8,32]{1,0:T(8,128)}', space=vmem, size = 0x1000, scoped, tag = 'scratch operand']
  #allocation4 [shape = 'f32[8,32]{1,0:T(8,128)}', space=vmem, size = 0x1000, scoped, tag = 'scratch operand']
  %s0 = inlined_call_operand.hbm [shape: bf16[1,8,8,16], index: 0, kind: input, shape index: {}]
  %s1 = inlined_call_operand.hbm [shape: bf16[1,1,16,128], index: 1, kind: input, shape index: {}]
  %s2 = inlined_call_operand.hbm [shape: bf16[1,32,128], index: 2, kind: input, shape index: {}]
  %s3 = inlined_call_operand.vmem [shape: f32[1,1,128], index: 3, kind: input, shape index: {}]
  %s4 = inlined_call_operand.hbm [shape: bf16[1,8,8,32], index: 4, kind: output, shape index: {}]
  %s5 = sld [smem:[#allocation0]]
  $region42: #{tpu_custom_call.1} parent=0
    _
  %s7 = ssub.s32 1, %s5
  %s8 = scalar_select 0, %s7, %s5
  $region1: #{tpu_custom_call.1} parent=0
    #allocation5 [shape = 'u8[16384]{0}', space=vmem, size = 0x4000, scoped, tag = 'input window, operand 0, single buffered']
    #allocation6 [shape = 's32[1]{0}', space=sflag, size = 0x4, scoped, tag = 'scoped memory for tpu_custom_call.1']
    #allocation7 [shape = 's32[1]{0}', space=sflag, size = 0x4, scoped, tag = 'scoped memory for tpu_custom_call.1']
    #allocation8 [shape = 'u8[4096]{0}', space=vmem, size = 0x1000, scoped, tag = 'input window, operand 1, single buffered']
    #allocation9 [shape = 's32[1]{0}', space=sflag, size = 0x4, scoped, tag = 'scoped memory for tpu_custom_call.1']
    #allocation10 [shape = 'u8[8192]{0}', space=vmem, size = 0x2000, scoped, tag = 'input window, operand 2, single buffered']
    #allocation11 [shape = 'u8[16384]{0}', space=vmem, size = 0x4000, scoped, tag = 'output window, operand 0, single buffered']
    %9 = vsyncpa [#allocation6], 0
    %10 = vsyncpa [#allocation9], 0
    %11 = vsyncpa [#allocation7], 0
    // Predicated region
    $region2: #{tpu_custom_call.1} parent=1 // pred_check
      _
    $region3: #{tpu_custom_call.1} parent=1 // pred_check_branch
      %13 = sbr.rel (0) target = $region5
    $region4: #{tpu_custom_call.1} parent=1 // pred_region
      %s14 = smul.u32 0, 2
      %s15 = ssub.s32 0, %s14
      %s16 = smul.u32 0, %s15
      %s17 = sadd.s32 0, %s16
      %s18 = smul.u32 8, %s17
      %s20 = ssub.s32 512, 512
      %21 = vsyncadd [#allocation6], %s20
      %s22 = smul.addr %s18, 64
      %s23 = scalar_lea.hbm %s0, %s22
      %s24 = sshll.u32 [#allocation5], 4
      %s25 = int_to_ptr.vmem [resolvable:$true] %s24
      %30 = dma.hbm_to_vmem [thread:$0]  %s23, 512, %s25, [#allocation6], 64, 64, 4
    $region5: #{tpu_custom_call.1} parent=1 // pred_fallthru
      _
    // Predicated region
    $region6: #{tpu_custom_call.1} parent=1 // pred_check
      _
    $region7: #{tpu_custom_call.1} parent=1 // pred_check_branch
      %32 = sbr.rel (0) target = $region9
    $region8: #{tpu_custom_call.1} parent=1 // pred_region
      %s34 = ssub.s32 128, 128
      %35 = vsyncadd [#allocation9], %s34
      %s36 = sshll.u32 [#allocation8], 4
      %s37 = int_to_ptr.vmem [resolvable:$true] %s36
      %42 = dma.hbm_to_vmem [thread:$0]  %s1, 128, %s37, [#allocation9], 64, 64, 4
    $region9: #{tpu_custom_call.1} parent=1 // pred_fallthru
      _
    // Predicated region
    $region10: #{tpu_custom_call.1} parent=1 // pred_check
      _
    $region11: #{tpu_custom_call.1} parent=1 // pred_check_branch
      %44 = sbr.rel (0) target = $region13
    $region12: #{tpu_custom_call.1} parent=1 // pred_region
      %s46 = ssub.s32 256, 256
      %47 = vsyncadd [#allocation9], %s46
      %s48 = sshll.u32 [#allocation10], 4
      %s49 = int_to_ptr.vmem [resolvable:$true] %s48
      %54 = dma.hbm_to_vmem [thread:$0]  %s2, 256, %s49, [#allocation9], 64, 64, 4
    $region13: #{tpu_custom_call.1} parent=1 // pred_fallthru
      _
    // Predicated region
    $region14: #{tpu_custom_call.1} parent=1 // pred_check
      _
    $region15: #{tpu_custom_call.1} parent=1 // pred_check_branch
      %56 = sbr.rel (0) target = $region17
    $region16: #{tpu_custom_call.1} parent=1 // pred_region
      _
    $region17: #{tpu_custom_call.1} parent=1 // pred_fallthru
      _
    // Predicated region
    $region18: #{tpu_custom_call.1} parent=1 // pred_check
      _
    $region19: #{tpu_custom_call.1} parent=1 // pred_check_branch
      %58 = sbr.rel (0) target = $region21
    $region20: #{tpu_custom_call.1} parent=1 // pred_region
      %59 = dma.done [#allocation6], 512
    $region21: #{tpu_custom_call.1} parent=1 // pred_fallthru
      _
    // Predicated region
    $region22: #{tpu_custom_call.1} parent=1 // pred_check
      _
    $region23: #{tpu_custom_call.1} parent=1 // pred_check_branch
      %61 = sbr.rel (0) target = $region25
    $region24: #{tpu_custom_call.1} parent=1 // pred_region
      %62 = dma.done [#allocation9], 128
    $region25: #{tpu_custom_call.1} parent=1 // pred_fallthru
      _
    // Predicated region
    $region26: #{tpu_custom_call.1} parent=1 // pred_check
      _
    $region27: #{tpu_custom_call.1} parent=1 // pred_check_branch
      %64 = sbr.rel (0) target = $region29
    $region28: #{tpu_custom_call.1} parent=1 // pred_region
      %65 = dma.done [#allocation9], 256
    $region29: #{tpu_custom_call.1} parent=1 // pred_fallthru
      _
    %s66 = smul.u32 0, 2
    %s67 = ssub.s32 0, %s66
    %s68 = smul.u32 0, %s67
    %s69 = sadd.s32 0, %s68
    %s70 = smul.u32 8, %s69
    %s71 = smul.u32 0, 2
    %s72 = ssub.s32 0, %s71
    %s73 = smul.u32 0, %s72
    %s74 = sadd.s32 0, %s73
    %s75 = smul.u32 8, %s74
    %p77 = scmp.eq.s32.totalorder 0, 0
    // Predicated region
    $region30: #{tpu_custom_call.1} parent=1 // pred_check
      %p78 = pneg %p77
    $region31: #{tpu_custom_call.1} parent=1 // pred_check_branch
      %80 = sbr.rel (%p78) target = $region33
    $region32: #{tpu_custom_call.1} parent=1 // pred_region
      %vm81 = vcmask 261120
      %82 = vst.msk [vmem:[#allocation3] sm:$0xff] %vm81, 0.0
      %83 = vst.msk [vmem:[#allocation4] sm:$0xff] %vm81, 0.0
    $region33: #{tpu_custom_call.1} parent=1 // pred_fallthru
      _
    %v84 = vld [vmem:[#allocation5] sm:$0xf]
    %v85 = vld [vmem:[#allocation5 + $0x4] sm:$0xf]
    %v86 = vld [vmem:[#allocation5 + $0x8] sm:$0xf]
    %v87 = vld [vmem:[#allocation5 + $0xc] sm:$0xf]
    %v88 = vld [vmem:[#allocation5 + $0x10] sm:$0xf]
    %v89 = vld [vmem:[#allocation5 + $0x14] sm:$0xf]
    %v90 = vld [vmem:[#allocation5 + $0x18] sm:$0xf]
    %v91 = vld [vmem:[#allocation5 + $0x1c] sm:$0xf]
    %v92 = vld [vmem:[#allocation8] sm:$0xf]
    %v93 = vld [vmem:[#allocation8 + $0x4] sm:$0xf]
    %v94 = vld [vmem:[%s3] sm:$0x1]
    %v96 = vlaneseq
    %v97 = vshrl.u32 %v96, 7
    %v98 = vsub.s32 0, %v97
    %v99 = vrot.slane %v94, %v98
    %v109 = vunpack.c.l.b16 %v84
    %v110 = vunpack.c.l.b16 %v85
    %v111 = vunpack.c.l.b16 %v86
    %v112 = vunpack.c.l.b16 %v87
    %v113 = vunpack.c.l.b16 %v88
    %v114 = vunpack.c.l.b16 %v89
    %v115 = vunpack.c.l.b16 %v90
    %v116 = vunpack.c.l.b16 %v91
    %v117 = vpack.c.b16 %v110, %v109
    %v118 = vpack.c.b16 %v112, %v111
    %v119 = vpack.c.b16 %v114, %v113
    %v120 = vpack.c.b16 %v116, %v115
    %v123 = vunpack.c.l.b16 %v92
    %v124 = vunpack.c.l.b16 %v93
    %v125 = vpack.c.b16 %v124, %v123
    %vm127 = vcmask 130048
    %v129 = vsel %vm127, %v117, 0
    %v132 = vsel %vm127, %v118, 0
    %v135 = vsel %vm127, %v119, 0
    %v138 = vsel %vm127, %v120, 0
    %140 = vmatprep.subr.bf16.mxu0 0
    %141 = vmatpush1.bf16.msra.mxu0 0
    %142 = vmatprep.subr.bf16.mxu0 0
    %143 = vmatpush1.bf16.msra.mxu0 0
    %144 = vmatprep.subr.bf16.mxu0 0
    %145 = vmatpush1.bf16.msra.mxu0 0
    %146 = vmatprep.subr.bf16.mxu0 0
    %147 = vmatpush1.bf16.msra.mxu0 0
    %148 = vmatprep.subr.bf16.mxu0 0
    %149 = vmatpush1.bf16.msra.mxu0 0
    %150 = vmatprep.subr.bf16.mxu0 0
    %151 = vmatpush1.bf16.msra.mxu0 0
    %152 = vmatprep.subr.bf16.mxu0 0
    %153 = vmatpush1.bf16.msra.mxu0 0
    %154 = vmatprep.subr.bf16.mxu0 0
    %155 = vmatpush1.bf16.msra.mxu0 %v125
    %156 = vmatprep.subr.bf16.mxu0 0
    %157 = vmatpush2.bf16.msra.mxu0 0
    %158 = vmatprep.subr.bf16.mxu0 0
    %159 = vmatpush2.bf16.msra.mxu0 0
    %160 = vmatprep.subr.bf16.mxu0 0
    %161 = vmatpush2.bf16.msra.mxu0 0
    %162 = vmatprep.subr.bf16.mxu0 0
    %163 = vmatpush2.bf16.msra.mxu0 0
    %164 = vmatprep.subr.bf16.mxu0 0
    %165 = vmatpush2.bf16.msra.mxu0 0
    %166 = vmatprep.subr.bf16.mxu0 0
    %167 = vmatpush2.bf16.msra.mxu0 0
    %168 = vmatprep.subr.bf16.mxu0 0
    %169 = vmatpush2.bf16.msra.mxu0 0
    %170 = vmatprep.subr.bf16.mxu0 0
    %171 = vmatpush2.bf16.msra.mxu0 0
    %172 = vmatprep.mubr.bf16.mxu0 0
    %173 = vmatmul.mubr.bf16.gmra.mxu0 %v129
    %v174 = vpop.f32.mrf.mxu0
    %v175 = vadd.f32 %v99, %v174
    %v176 = vpop.f32.mrf.mxu0
    %v177 = vpop.f32.mrf.mxu0
    %v178 = vadd.f32 %v99, %v177
    %v179 = vpop.f32.mrf.mxu0
    %180 = vmatprep.mubr.bf16.mxu0 0
    %181 = vmatmul.mubr.bf16.gmra.mxu0 %v132
    %v182 = vpop.f32.mrf.mxu0
    %v183 = vadd.f32 %v99, %v182
    %v184 = vpop.f32.mrf.mxu0
    %v185 = vpop.f32.mrf.mxu0
    %v186 = vadd.f32 %v99, %v185
    %v187 = vpop.f32.mrf.mxu0
    %188 = vmatprep.mubr.bf16.mxu0 0
    %189 = vmatmul.mubr.bf16.gmra.mxu0 %v135
    %v190 = vpop.f32.mrf.mxu0
    %v191 = vadd.f32 %v99, %v190
    %v192 = vpop.f32.mrf.mxu0
    %v193 = vpop.f32.mrf.mxu0
    %v194 = vadd.f32 %v99, %v193
    %v195 = vpop.f32.mrf.mxu0
    %196 = vmatprep.mubr.bf16.mxu0 0
    %197 = vmatmul.mubr.bf16.gmra.mxu0 %v138
    %v198 = vpop.f32.mrf.mxu0
    %v199 = vadd.f32 %v99, %v198
    %v200 = vpop.f32.mrf.mxu0
    %v201 = vpop.f32.mrf.mxu0
    %v202 = vadd.f32 %v99, %v201
    %v203 = vpop.f32.mrf.mxu0
    %204 = vdwg.mxu0
    %205 = vst [vmem:[#allocation2] sm:$0xff] %v175
    %206 = vst [vmem:[#allocation2 + $0x8] sm:$0xff] %v178
    %207 = vst [vmem:[#allocation2 + $0x10] sm:$0xff] %v183
    %208 = vst [vmem:[#allocation2 + $0x18] sm:$0xff] %v186
    %209 = vst [vmem:[#allocation2 + $0x20] sm:$0xff] %v191
    %210 = vst [vmem:[#allocation2 + $0x28] sm:$0xff] %v194
    %211 = vst [vmem:[#allocation2 + $0x30] sm:$0xff] %v199
    %212 = vst [vmem:[#allocation2 + $0x38] sm:$0xff] %v202
    %v213 = vld [vmem:[#allocation10] sm:$0xf]
    %v214 = vld [vmem:[#allocation10 + $0x4] sm:$0xf]
    %v215 = vld [vmem:[#allocation10 + $0x8] sm:$0xf]
    %v216 = vld [vmem:[#allocation10 + $0xc] sm:$0xf]
    %v217 = vld [vmem:[#allocation3] sm:$0xff]
    %v218 = vld [vmem:[#allocation4] sm:$0xff]
    %p219 = scmp.eq.s32.totalorder 0, 1
    %s220 = scalar_select %p219, 7, 0
    %s221 = smul.u32 %s220, 8
    %s222 = scalar_lea.vmem [#allocation2], %s221
    %v223 = vld [vmem:[%s222] sm:$0xff]
    %v224 = vpack.c.bf16 %v217, %v217
    %v229 = vunpack.c.l.b16 %v213
    %v230 = vunpack.c.l.b16 %v214
    %v231 = vunpack.c.l.b16 %v215
    %v232 = vunpack.c.l.b16 %v216
    %v233 = vpack.c.b16 %v230, %v229
    %v234 = vpack.c.b16 %v232, %v231
    %vm237 = vcmask 261120
    %v239 = vsel %vm237, %v224, 0
    %241 = vmatprep.subr.bf16.mxu0 0
    %242 = vmatpush1.bf16.msra.mxu0 0
    %243 = vmatprep.subr.bf16.mxu0 0
    %244 = vmatpush1.bf16.msra.mxu0 0
    %245 = vmatprep.subr.bf16.mxu0 0
    %246 = vmatpush1.bf16.msra.mxu0 0
    %247 = vmatprep.subr.bf16.mxu0 0
    %248 = vmatpush1.bf16.msra.mxu0 0
    %249 = vmatprep.subr.bf16.mxu0 0
    %250 = vmatpush1.bf16.msra.mxu0 0
    %251 = vmatprep.subr.bf16.mxu0 0
    %252 = vmatpush1.bf16.msra.mxu0 0
    %253 = vmatprep.subr.bf16.mxu0 0
    %254 = vmatpush1.bf16.msra.mxu0 %v234
    %255 = vmatprep.subr.bf16.mxu0 0
    %256 = vmatpush1.bf16.msra.mxu0 %v233
    %257 = vmatprep.subr.bf16.mxu0 0
    %258 = vmatpush2.bf16.msra.mxu0 0
    %259 = vmatprep.subr.bf16.mxu0 0
    %260 = vmatpush2.bf16.msra.mxu0 0
    %261 = vmatprep.subr.bf16.mxu0 0
    %262 = vmatpush2.bf16.msra.mxu0 0
    %263 = vmatprep.subr.bf16.mxu0 0
    %264 = vmatpush2.bf16.msra.mxu0 0
    %265 = vmatprep.subr.bf16.mxu0 0
    %266 = vmatpush2.bf16.msra.mxu0 0
    %267 = vmatprep.subr.bf16.mxu0 0
    %268 = vmatpush2.bf16.msra.mxu0 0
    %269 = vmatprep.subr.bf16.mxu0 0
    %270 = vmatpush2.bf16.msra.mxu0 0
    %271 = vmatprep.subr.bf16.mxu0 0
    %272 = vmatpush2.bf16.msra.mxu0 0
    %273 = vmatprep.mubr.bf16.mxu0 0
    %274 = vmatmul.mubr.bf16.gmra.mxu0 %v239
    %v275 = vpop.f32.mrf.mxu0
    %v276 = vadd.f32 0.0, %v275
    %v277 = vpop.f32.mrf.mxu0
    %v278 = vpop.f32.mrf.mxu0
    %v279 = vpop.f32.mrf.mxu0
    %280 = vdwg.mxu0
    %v281 = vadd.f32 %v223, %v276
    %v282 = vxor.u32 %v281, 2147483648
    %v283 = vmul.f32 %v282, 1.442695
    %v284 = vpow.pop %v283
    %v285 = vadd.f32 %v284, 1.0
    %v286 = vrcp.pop %v285
    %v287 = vmul.f32 1.0, %v286
    %v288 = vtanh.pop %v281
    %290 = vrot.lane.b32.xlu0 %v218, 32
    %v291 = vpop.permute.xlu0 %290
    %v293 = vmul.f32 %v287, %v291
    %295 = vrot.lane.b32.xlu0 %v288, 32
    %v296 = vpop.permute.xlu0 %295
    %v298 = vmul.f32 %v287, %v296
    %300 = vrot.lane.b32.xlu0 %v298, 32
    %v301 = vpop.permute.xlu0 %300
    %v303 = vadd.f32 %v293, %v301
    %v304 = vtanh.pop %v303
    %306 = vrot.lane.b32.xlu0 %v304, 32
    %v307 = vpop.permute.xlu0 %306
    %v309 = vmul.f32 %v287, %v307
    %v310 = vpack.c.bf16 %v309, %v309
    %v312 = vunpack.c.l.b16 %v310
    %v313 = vpack.c.b16 %v312, %v312
    %314 = vrot.lane.b32.xlu0 %v313, 64
    %v315 = vpop.permute.xlu0 %314
    %s317 = smul.addr %s220, 4
    %s318 = scalar_lea.vmem [#allocation11], %s317
    %vm319 = vcmask 257024
    %320 = vst.msk [vmem:[%s318] sm:$0xf] %vm319, %v315
    %s321 = scalar_select %p219, 6, 1
    %s322 = smul.u32 %s321, 8
    %s323 = scalar_lea.vmem [#allocation2], %s322
    %v324 = vld [vmem:[%s323] sm:$0xff]
    %325 = vrot.lane.b32.xlu0 %v310, 64
    %v326 = vpop.permute.xlu0 %325
    %v328 = vsel %vm237, %v326, 0
    %330 = vmatprep.subr.bf16.mxu0 0
    %331 = vmatpush1.bf16.msra.mxu0 0
    %332 = vmatprep.subr.bf16.mxu0 0
    %333 = vmatpush1.bf16.msra.mxu0 0
    %334 = vmatprep.subr.bf16.mxu0 0
    %335 = vmatpush1.bf16.msra.mxu0 0
    %336 = vmatprep.subr.bf16.mxu0 0
    %337 = vmatpush1.bf16.msra.mxu0 0
    %338 = vmatprep.subr.bf16.mxu0 0
    %339 = vmatpush1.bf16.msra.mxu0 0
    %340 = vmatprep.subr.bf16.mxu0 0
    %341 = vmatpush1.bf16.msra.mxu0 0
    %342 = vmatprep.subr.bf16.mxu0 0
    %343 = vmatpush1.bf16.msra.mxu0 %v234
    %344 = vmatprep.subr.bf16.mxu0 0
    %345 = vmatpush1.bf16.msra.mxu0 %v233
    %346 = vmatprep.subr.bf16.mxu0 0
    %347 = vmatpush2.bf16.msra.mxu0 0
    %348 = vmatprep.subr.bf16.mxu0 0
    %349 = vmatpush2.bf16.msra.mxu0 0
    %350 = vmatprep.subr.bf16.mxu0 0
    %351 = vmatpush2.bf16.msra.mxu0 0
    %352 = vmatprep.subr.bf16.mxu0 0
    %353 = vmatpush2.bf16.msra.mxu0 0
    %354 = vmatprep.subr.bf16.mxu0 0
    %355 = vmatpush2.bf16.msra.mxu0 0
    %356 = vmatprep.subr.bf16.mxu0 0
    %357 = vmatpush2.bf16.msra.mxu0 0
    %358 = vmatprep.subr.bf16.mxu0 0
    %359 = vmatpush2.bf16.msra.mxu0 0
    %360 = vmatprep.subr.bf16.mxu0 0
    %361 = vmatpush2.bf16.msra.mxu0 0
    %362 = vmatprep.mubr.bf16.mxu0 0
    %363 = vmatmul.mubr.bf16.gmra.mxu0 %v328
    %v364 = vpop.f32.mrf.mxu0
    %v365 = vadd.f32 0.0, %v364
    %v366 = vpop.f32.mrf.mxu0
    %v367 = vpop.f32.mrf.mxu0
    %v368 = vpop.f32.mrf.mxu0
    %369 = vdwg.mxu0
    %v370 = vadd.f32 %v324, %v365
    %v371 = vxor.u32 %v370, 2147483648
    %v372 = vmul.f32 %v371, 1.442695
    %v373 = vpow.pop %v372
    %v374 = vadd.f32 %v373, 1.0
    %v375 = vrcp.pop %v374
    %v376 = vmul.f32 1.0, %v375
    %v377 = vtanh.pop %v370
    %v378 = vmul.f32 %v376, %v303
    %380 = vrot.lane.b32.xlu0 %v377, 32
    %v381 = vpop.permute.xlu0 %380
    %v383 = vmul.f32 %v376, %v381
    %385 = vrot.lane.b32.xlu0 %v383, 32
    %v386 = vpop.permute.xlu0 %385
    %v388 = vadd.f32 %v378, %v386
    %v389 = vtanh.pop %v388
    %391 = vrot.lane.b32.xlu0 %v389, 32
    %v392 = vpop.permute.xlu0 %391
    %v394 = vmul.f32 %v376, %v392
    %v395 = vpack.c.bf16 %v394, %v394
    %v397 = vunpack.c.l.b16 %v395
    %v398 = vpack.c.b16 %v397, %v397
    %399 = vrot.lane.b32.xlu0 %v398, 64
    %v400 = vpop.permute.xlu0 %399
    %s402 = smul.addr %s321, 4
    %s403 = scalar_lea.vmem [#allocation11], %s402
    %404 = vst.msk [vmem:[%s403] sm:$0xf] %vm319, %v400
    %s405 = scalar_select %p219, 5, 2
    %s406 = smul.u32 %s405, 8
    %s407 = scalar_lea.vmem [#allocation2], %s406
    %v408 = vld [vmem:[%s407] sm:$0xff]
    %409 = vrot.lane.b32.xlu0 %v395, 64
    %v410 = vpop.permute.xlu0 %409
    %v412 = vsel %vm237, %v410, 0
    %414 = vmatprep.subr.bf16.mxu0 0
    %415 = vmatpush1.bf16.msra.mxu0 0
    %416 = vmatprep.subr.bf16.mxu0 0
    %417 = vmatpush1.bf16.msra.mxu0 0
    %418 = vmatprep.subr.bf16.mxu0 0
    %419 = vmatpush1.bf16.msra.mxu0 0
    %420 = vmatprep.subr.bf16.mxu0 0
    %421 = vmatpush1.bf16.msra.mxu0 0
    %422 = vmatprep.subr.bf16.mxu0 0
    %423 = vmatpush1.bf16.msra.mxu0 0
    %424 = vmatprep.subr.bf16.mxu0 0
    %425 = vmatpush1.bf16.msra.mxu0 0
    %426 = vmatprep.subr.bf16.mxu0 0
    %427 = vmatpush1.bf16.msra.mxu0 %v234
    %428 = vmatprep.subr.bf16.mxu0 0
    %429 = vmatpush1.bf16.msra.mxu0 %v233
    %430 = vmatprep.subr.bf16.mxu0 0
    %431 = vmatpush2.bf16.msra.mxu0 0
    %432 = vmatprep.subr.bf16.mxu0 0
    %433 = vmatpush2.bf16.msra.mxu0 0
    %434 = vmatprep.subr.bf16.mxu0 0
    %435 = vmatpush2.bf16.msra.mxu0 0
    %436 = vmatprep.subr.bf16.mxu0 0
    %437 = vmatpush2.bf16.msra.mxu0 0
    %438 = vmatprep.subr.bf16.mxu0 0
    %439 = vmatpush2.bf16.msra.mxu0 0
    %440 = vmatprep.subr.bf16.mxu0 0
    %441 = vmatpush2.bf16.msra.mxu0 0
    %442 = vmatprep.subr.bf16.mxu0 0
    %443 = vmatpush2.bf16.msra.mxu0 0
    %444 = vmatprep.subr.bf16.mxu0 0
    %445 = vmatpush2.bf16.msra.mxu0 0
    %446 = vmatprep.mubr.bf16.mxu0 0
    %447 = vmatmul.mubr.bf16.gmra.mxu0 %v412
    %v448 = vpop.f32.mrf.mxu0
    %v449 = vadd.f32 0.0, %v448
    %v450 = vpop.f32.mrf.mxu0
    %v451 = vpop.f32.mrf.mxu0
    %v452 = vpop.f32.mrf.mxu0
    %453 = vdwg.mxu0
    %v454 = vadd.f32 %v408, %v449
    %v455 = vxor.u32 %v454, 2147483648
    %v456 = vmul.f32 %v455, 1.442695
    %v457 = vpow.pop %v456
    %v458 = vadd.f32 %v457, 1.0
    %v459 = vrcp.pop %v458
    %v460 = vmul.f32 1.0, %v459
    %v461 = vtanh.pop %v454
    %v462 = vmul.f32 %v460, %v388
    %464 = vrot.lane.b32.xlu0 %v461, 32
    %v465 = vpop.permute.xlu0 %464
    %v467 = vmul.f32 %v460, %v465
    %469 = vrot.lane.b32.xlu0 %v467, 32
    %v470 = vpop.permute.xlu0 %469
    %v472 = vadd.f32 %v462, %v470
    %v473 = vtanh.pop %v472
    %475 = vrot.lane.b32.xlu0 %v473, 32
    %v476 = vpop.permute.xlu0 %475
    %v478 = vmul.f32 %v460, %v476
    %v479 = vpack.c.bf16 %v478, %v478
    %v481 = vunpack.c.l.b16 %v479
    %v482 = vpack.c.b16 %v481, %v481
    %483 = vrot.lane.b32.xlu0 %v482, 64
    %v484 = vpop.permute.xlu0 %483
    %s486 = smul.addr %s405, 4
    %s487 = scalar_lea.vmem [#allocation11], %s486
    %488 = vst.msk [vmem:[%s487] sm:$0xf] %vm319, %v484
    %s489 = scalar_select %p219, 4, 3
    %s490 = smul.u32 %s489, 8
    %s491 = scalar_lea.vmem [#allocation2], %s490
    %v492 = vld [vmem:[%s491] sm:$0xff]
    %493 = vrot.lane.b32.xlu0 %v479, 64
    %v494 = vpop.permute.xlu0 %493
    %v496 = vsel %vm237, %v494, 0
    %498 = vmatprep.subr.bf16.mxu0 0
    %499 = vmatpush1.bf16.msra.mxu0 0
    %500 = vmatprep.subr.bf16.mxu0 0
    %501 = vmatpush1.bf16.msra.mxu0 0
    %502 = vmatprep.subr.bf16.mxu0 0
    %503 = vmatpush1.bf16.msra.mxu0 0
    %504 = vmatprep.subr.bf16.mxu0 0
    %505 = vmatpush1.bf16.msra.mxu0 0
    %506 = vmatprep.subr.bf16.mxu0 0
    %507 = vmatpush1.bf16.msra.mxu0 0
    %508 = vmatprep.subr.bf16.mxu0 0
    %509 = vmatpush1.bf16.msra.mxu0 0
    %510 = vmatprep.subr.bf16.mxu0 0
    %511 = vmatpush1.bf16.msra.mxu0 %v234
    %512 = vmatprep.subr.bf16.mxu0 0
    %513 = vmatpush1.bf16.msra.mxu0 %v233
    %514 = vmatprep.subr.bf16.mxu0 0
    %515 = vmatpush2.bf16.msra.mxu0 0
    %516 = vmatprep.subr.bf16.mxu0 0
    %517 = vmatpush2.bf16.msra.mxu0 0
    %518 = vmatprep.subr.bf16.mxu0 0
    %519 = vmatpush2.bf16.msra.mxu0 0
    %520 = vmatprep.subr.bf16.mxu0 0
    %521 = vmatpush2.bf16.msra.mxu0 0
    %522 = vmatprep.subr.bf16.mxu0 0
    %523 = vmatpush2.bf16.msra.mxu0 0
    %524 = vmatprep.subr.bf16.mxu0 0
    %525 = vmatpush2.bf16.msra.mxu0 0
    %526 = vmatprep.subr.bf16.mxu0 0
    %527 = vmatpush2.bf16.msra.mxu0 0
    %528 = vmatprep.subr.bf16.mxu0 0
    %529 = vmatpush2.bf16.msra.mxu0 0
    %530 = vmatprep.mubr.bf16.mxu0 0
    %531 = vmatmul.mubr.bf16.gmra.mxu0 %v496
    %v532 = vpop.f32.mrf.mxu0
    %v533 = vadd.f32 0.0, %v532
    %v534 = vpop.f32.mrf.mxu0
    %v535 = vpop.f32.mrf.mxu0
    %v536 = vpop.f32.mrf.mxu0
    %537 = vdwg.mxu0
    %v538 = vadd.f32 %v492, %v533
    %v539 = vxor.u32 %v538, 2147483648
    %v540 = vmul.f32 %v539, 1.442695
    %v541 = vpow.pop %v540
    %v542 = vadd.f32 %v541, 1.0
    %v543 = vrcp.pop %v542
    %v544 = vmul.f32 1.0, %v543
    %v545 = vtanh.pop %v538
    %v546 = vmul.f32 %v544, %v472
    %548 = vrot.lane.b32.xlu0 %v545, 32
    %v549 = vpop.permute.xlu0 %548
    %v551 = vmul.f32 %v544, %v549
    %553 = vrot.lane.b32.xlu0 %v551, 32
    %v554 = vpop.permute.xlu0 %553
    %v556 = vadd.f32 %v546, %v554
    %v557 = vtanh.pop %v556
    %559 = vrot.lane.b32.xlu0 %v557, 32
    %v560 = vpop.permute.xlu0 %559
    %v562 = vmul.f32 %v544, %v560
    %v563 = vpack.c.bf16 %v562, %v562
    %v565 = vunpack.c.l.b16 %v563
    %v566 = vpack.c.b16 %v565, %v565
    %567 = vrot.lane.b32.xlu0 %v566, 64
    %v568 = vpop.permute.xlu0 %567
    %s570 = smul.addr %s489, 4
    %s571 = scalar_lea.vmem [#allocation11], %s570
    %572 = vst.msk [vmem:[%s571] sm:$0xf] %vm319, %v568
    %s573 = scalar_select %p219, 3, 4
    %s574 = smul.u32 %s573, 8
    %s575 = scalar_lea.vmem [#allocation2], %s574
    %v576 = vld [vmem:[%s575] sm:$0xff]
    %577 = vrot.lane.b32.xlu0 %v563, 64
    %v578 = vpop.permute.xlu0 %577
    %v580 = vsel %vm237, %v578, 0
    %582 = vmatprep.subr.bf16.mxu0 0
    %583 = vmatpush1.bf16.msra.mxu0 0
    %584 = vmatprep.subr.bf16.mxu0 0
    %585 = vmatpush1.bf16.msra.mxu0 0
    %586 = vmatprep.subr.bf16.mxu0 0
    %587 = vmatpush1.bf16.msra.mxu0 0
    %588 = vmatprep.subr.bf16.mxu0 0
    %589 = vmatpush1.bf16.msra.mxu0 0
    %590 = vmatprep.subr.bf16.mxu0 0
    %591 = vmatpush1.bf16.msra.mxu0 0
    %592 = vmatprep.subr.bf16.mxu0 0
    %593 = vmatpush1.bf16.msra.mxu0 0
    %594 = vmatprep.subr.bf16.mxu0 0
    %595 = vmatpush1.bf16.msra.mxu0 %v234
    %596 = vmatprep.subr.bf16.mxu0 0
    %597 = vmatpush1.bf16.msra.mxu0 %v233
    %598 = vmatprep.subr.bf16.mxu0 0
    %599 = vmatpush2.bf16.msra.mxu0 0
    %600 = vmatprep.subr.bf16.mxu0 0
    %601 = vmatpush2.bf16.msra.mxu0 0
    %602 = vmatprep.subr.bf16.mxu0 0
    %603 = vmatpush2.bf16.msra.mxu0 0
    %604 = vmatprep.subr.bf16.mxu0 0
    %605 = vmatpush2.bf16.msra.mxu0 0
    %606 = vmatprep.subr.bf16.mxu0 0
    %607 = vmatpush2.bf16.msra.mxu0 0
    %608 = vmatprep.subr.bf16.mxu0 0
    %609 = vmatpush2.bf16.msra.mxu0 0
    %610 = vmatprep.subr.bf16.mxu0 0
    %611 = vmatpush2.bf16.msra.mxu0 0
    %612 = vmatprep.subr.bf16.mxu0 0
    %613 = vmatpush2.bf16.msra.mxu0 0
    %614 = vmatprep.mubr.bf16.mxu0 0
    %615 = vmatmul.mubr.bf16.gmra.mxu0 %v580
    %v616 = vpop.f32.mrf.mxu0
    %v617 = vadd.f32 0.0, %v616
    %v618 = vpop.f32.mrf.mxu0
    %v619 = vpop.f32.mrf.mxu0
    %v620 = vpop.f32.mrf.mxu0
    %621 = vdwg.mxu0
    %v622 = vadd.f32 %v576, %v617
    %v623 = vxor.u32 %v622, 2147483648
    %v624 = vmul.f32 %v623, 1.442695
    %v625 = vpow.pop %v624
    %v626 = vadd.f32 %v625, 1.0
    %v627 = vrcp.pop %v626
    %v628 = vmul.f32 1.0, %v627
    %v629 = vtanh.pop %v622
    %v630 = vmul.f32 %v628, %v556
    %632 = vrot.lane.b32.xlu0 %v629, 32
    %v633 = vpop.permute.xlu0 %632
    %v635 = vmul.f32 %v628, %v633
    %637 = vrot.lane.b32.xlu0 %v635, 32
    %v638 = vpop.permute.xlu0 %637
    %v640 = vadd.f32 %v630, %v638
    %v641 = vtanh.pop %v640
    %643 = vrot.lane.b32.xlu0 %v641, 32
    %v644 = vpop.permute.xlu0 %643
    %v646 = vmul.f32 %v628, %v644
    %v647 = vpack.c.bf16 %v646, %v646
    %v649 = vunpack.c.l.b16 %v647
    %v650 = vpack.c.b16 %v649, %v649
    %651 = vrot.lane.b32.xlu0 %v650, 64
    %v652 = vpop.permute.xlu0 %651
    %s654 = smul.addr %s573, 4
    %s655 = scalar_lea.vmem [#allocation11], %s654
    %656 = vst.msk [vmem:[%s655] sm:$0xf] %vm319, %v652
    %s657 = scalar_select %p219, 2, 5
    %s658 = smul.u32 %s657, 8
    %s659 = scalar_lea.vmem [#allocation2], %s658
    %v660 = vld [vmem:[%s659] sm:$0xff]
    %661 = vrot.lane.b32.xlu0 %v647, 64
    %v662 = vpop.permute.xlu0 %661
    %v664 = vsel %vm237, %v662, 0
    %666 = vmatprep.subr.bf16.mxu0 0
    %667 = vmatpush1.bf16.msra.mxu0 0
    %668 = vmatprep.subr.bf16.mxu0 0
    %669 = vmatpush1.bf16.msra.mxu0 0
    %670 = vmatprep.subr.bf16.mxu0 0
    %671 = vmatpush1.bf16.msra.mxu0 0
    %672 = vmatprep.subr.bf16.mxu0 0
    %673 = vmatpush1.bf16.msra.mxu0 0
    %674 = vmatprep.subr.bf16.mxu0 0
    %675 = vmatpush1.bf16.msra.mxu0 0
    %676 = vmatprep.subr.bf16.mxu0 0
    %677 = vmatpush1.bf16.msra.mxu0 0
    %678 = vmatprep.subr.bf16.mxu0 0
    %679 = vmatpush1.bf16.msra.mxu0 %v234
    %680 = vmatprep.subr.bf16.mxu0 0
    %681 = vmatpush1.bf16.msra.mxu0 %v233
    %682 = vmatprep.subr.bf16.mxu0 0
    %683 = vmatpush2.bf16.msra.mxu0 0
    %684 = vmatprep.subr.bf16.mxu0 0
    %685 = vmatpush2.bf16.msra.mxu0 0
    %686 = vmatprep.subr.bf16.mxu0 0
    %687 = vmatpush2.bf16.msra.mxu0 0
    %688 = vmatprep.subr.bf16.mxu0 0
    %689 = vmatpush2.bf16.msra.mxu0 0
    %690 = vmatprep.subr.bf16.mxu0 0
    %691 = vmatpush2.bf16.msra.mxu0 0
    %692 = vmatprep.subr.bf16.mxu0 0
    %693 = vmatpush2.bf16.msra.mxu0 0
    %694 = vmatprep.subr.bf16.mxu0 0
    %695 = vmatpush2.bf16.msra.mxu0 0
    %696 = vmatprep.subr.bf16.mxu0 0
    %697 = vmatpush2.bf16.msra.mxu0 0
    %698 = vmatprep.mubr.bf16.mxu0 0
    %699 = vmatmul.mubr.bf16.gmra.mxu0 %v664
    %v700 = vpop.f32.mrf.mxu0
    %v701 = vadd.f32 0.0, %v700
    %v702 = vpop.f32.mrf.mxu0
    %v703 = vpop.f32.mrf.mxu0
    %v704 = vpop.f32.mrf.mxu0
    %705 = vdwg.mxu0
    %v706 = vadd.f32 %v660, %v701
    %v707 = vxor.u32 %v706, 2147483648
    %v708 = vmul.f32 %v707, 1.442695
    %v709 = vpow.pop %v708
    %v710 = vadd.f32 %v709, 1.0
    %v711 = vrcp.pop %v710
    %v712 = vmul.f32 1.0, %v711
    %v713 = vtanh.pop %v706
    %v714 = vmul.f32 %v712, %v640
    %716 = vrot.lane.b32.xlu0 %v713, 32
    %v717 = vpop.permute.xlu0 %716
    %v719 = vmul.f32 %v712, %v717
    %721 = vrot.lane.b32.xlu0 %v719, 32
    %v722 = vpop.permute.xlu0 %721
    %v724 = vadd.f32 %v714, %v722
    %v725 = vtanh.pop %v724
    %727 = vrot.lane.b32.xlu0 %v725, 32
    %v728 = vpop.permute.xlu0 %727
    %v730 = vmul.f32 %v712, %v728
    %v731 = vpack.c.bf16 %v730, %v730
    %v733 = vunpack.c.l.b16 %v731
    %v734 = vpack.c.b16 %v733, %v733
    %735 = vrot.lane.b32.xlu0 %v734, 64
    %v736 = vpop.permute.xlu0 %735
    %s738 = smul.addr %s657, 4
    %s739 = scalar_lea.vmem [#allocation11], %s738
    %740 = vst.msk [vmem:[%s739] sm:$0xf] %vm319, %v736
    %s741 = scalar_select %p219, 1, 6
    %s742 = smul.u32 %s741, 8
    %s743 = scalar_lea.vmem [#allocation2], %s742
    %v744 = vld [vmem:[%s743] sm:$0xff]
    %745 = vrot.lane.b32.xlu0 %v731, 64
    %v746 = vpop.permute.xlu0 %745
    %v748 = vsel %vm237, %v746, 0
    %750 = vmatprep.subr.bf16.mxu0 0
    %751 = vmatpush1.bf16.msra.mxu0 0
    %752 = vmatprep.subr.bf16.mxu0 0
    %753 = vmatpush1.bf16.msra.mxu0 0
    %754 = vmatprep.subr.bf16.mxu0 0
    %755 = vmatpush1.bf16.msra.mxu0 0
    %756 = vmatprep.subr.bf16.mxu0 0
    %757 = vmatpush1.bf16.msra.mxu0 0
    %758 = vmatprep.subr.bf16.mxu0 0
    %759 = vmatpush1.bf16.msra.mxu0 0
    %760 = vmatprep.subr.bf16.mxu0 0
    %761 = vmatpush1.bf16.msra.mxu0 0
    %762 = vmatprep.subr.bf16.mxu0 0
    %763 = vmatpush1.bf16.msra.mxu0 %v234
    %764 = vmatprep.subr.bf16.mxu0 0
    %765 = vmatpush1.bf16.msra.mxu0 %v233
    %766 = vmatprep.subr.bf16.mxu0 0
    %767 = vmatpush2.bf16.msra.mxu0 0
    %768 = vmatprep.subr.bf16.mxu0 0
    %769 = vmatpush2.bf16.msra.mxu0 0
    %770 = vmatprep.subr.bf16.mxu0 0
    %771 = vmatpush2.bf16.msra.mxu0 0
    %772 = vmatprep.subr.bf16.mxu0 0
    %773 = vmatpush2.bf16.msra.mxu0 0
    %774 = vmatprep.subr.bf16.mxu0 0
    %775 = vmatpush2.bf16.msra.mxu0 0
    %776 = vmatprep.subr.bf16.mxu0 0
    %777 = vmatpush2.bf16.msra.mxu0 0
    %778 = vmatprep.subr.bf16.mxu0 0
    %779 = vmatpush2.bf16.msra.mxu0 0
    %780 = vmatprep.subr.bf16.mxu0 0
    %781 = vmatpush2.bf16.msra.mxu0 0
    %782 = vmatprep.mubr.bf16.mxu0 0
    %783 = vmatmul.mubr.bf16.gmra.mxu0 %v748
    %v784 = vpop.f32.mrf.mxu0
    %v785 = vadd.f32 0.0, %v784
    %v786 = vpop.f32.mrf.mxu0
    %v787 = vpop.f32.mrf.mxu0
    %v788 = vpop.f32.mrf.mxu0
    %789 = vdwg.mxu0
    %v790 = vadd.f32 %v744, %v785
    %v791 = vxor.u32 %v790, 2147483648
    %v792 = vmul.f32 %v791, 1.442695
    %v793 = vpow.pop %v792
    %v794 = vadd.f32 %v793, 1.0
    %v795 = vrcp.pop %v794
    %v796 = vmul.f32 1.0, %v795
    %v797 = vtanh.pop %v790
    %v798 = vmul.f32 %v796, %v724
    %800 = vrot.lane.b32.xlu0 %v797, 32
    %v801 = vpop.permute.xlu0 %800
    %v803 = vmul.f32 %v796, %v801
    %805 = vrot.lane.b32.xlu0 %v803, 32
    %v806 = vpop.permute.xlu0 %805
    %v808 = vadd.f32 %v798, %v806
    %v809 = vtanh.pop %v808
    %811 = vrot.lane.b32.xlu0 %v809, 32
    %v812 = vpop.permute.xlu0 %811
    %v814 = vmul.f32 %v796, %v812
    %v815 = vpack.c.bf16 %v814, %v814
    %v817 = vunpack.c.l.b16 %v815
    %v818 = vpack.c.b16 %v817, %v817
    %819 = vrot.lane.b32.xlu0 %v818, 64
    %v820 = vpop.permute.xlu0 %819
    %s822 = smul.addr %s741, 4
    %s823 = scalar_lea.vmem [#allocation11], %s822
    %824 = vst.msk [vmem:[%s823] sm:$0xf] %vm319, %v820
    %s825 = scalar_select %p219, 0, 7
    %s826 = smul.u32 %s825, 8
    %s827 = scalar_lea.vmem [#allocation2], %s826
    %v828 = vld [vmem:[%s827] sm:$0xff]
    %829 = vrot.lane.b32.xlu0 %v815, 64
    %v830 = vpop.permute.xlu0 %829
    %v832 = vsel %vm237, %v830, 0
    %834 = vmatprep.subr.bf16.mxu0 0
    %835 = vmatpush1.bf16.msra.mxu0 0
    %836 = vmatprep.subr.bf16.mxu0 0
    %837 = vmatpush1.bf16.msra.mxu0 0
    %838 = vmatprep.subr.bf16.mxu0 0
    %839 = vmatpush1.bf16.msra.mxu0 0
    %840 = vmatprep.subr.bf16.mxu0 0
    %841 = vmatpush1.bf16.msra.mxu0 0
    %842 = vmatprep.subr.bf16.mxu0 0
    %843 = vmatpush1.bf16.msra.mxu0 0
    %844 = vmatprep.subr.bf16.mxu0 0
    %845 = vmatpush1.bf16.msra.mxu0 0
    %846 = vmatprep.subr.bf16.mxu0 0
    %847 = vmatpush1.bf16.msra.mxu0 %v234
    %848 = vmatprep.subr.bf16.mxu0 0
    %849 = vmatpush1.bf16.msra.mxu0 %v233
    %850 = vmatprep.subr.bf16.mxu0 0
    %851 = vmatpush2.bf16.msra.mxu0 0
    %852 = vmatprep.subr.bf16.mxu0 0
    %853 = vmatpush2.bf16.msra.mxu0 0
    %854 = vmatprep.subr.bf16.mxu0 0
    %855 = vmatpush2.bf16.msra.mxu0 0
    %856 = vmatprep.subr.bf16.mxu0 0
    %857 = vmatpush2.bf16.msra.mxu0 0
    %858 = vmatprep.subr.bf16.mxu0 0
    %859 = vmatpush2.bf16.msra.mxu0 0
    %860 = vmatprep.subr.bf16.mxu0 0
    %861 = vmatpush2.bf16.msra.mxu0 0
    %862 = vmatprep.subr.bf16.mxu0 0
    %863 = vmatpush2.bf16.msra.mxu0 0
    %864 = vmatprep.subr.bf16.mxu0 0
    %865 = vmatpush2.bf16.msra.mxu0 0
    %866 = vmatprep.mubr.bf16.mxu0 0
    %867 = vmatmul.mubr.bf16.gmra.mxu0 %v832
    %v868 = vpop.f32.mrf.mxu0
    %v869 = vadd.f32 0.0, %v868
    %v870 = vpop.f32.mrf.mxu0
    %v871 = vpop.f32.mrf.mxu0
    %v872 = vpop.f32.mrf.mxu0
    %873 = vdwg.mxu0
    %v874 = vadd.f32 %v828, %v869
    %v875 = vxor.u32 %v874, 2147483648
    %v876 = vmul.f32 %v875, 1.442695
    %v877 = vpow.pop %v876
    %v878 = vadd.f32 %v877, 1.0
    %v879 = vrcp.pop %v878
    %v880 = vmul.f32 1.0, %v879
    %v881 = vtanh.pop %v874
    %v882 = vmul.f32 %v880, %v808
    %884 = vrot.lane.b32.xlu0 %v881, 32
    %v885 = vpop.permute.xlu0 %884
    %v887 = vmul.f32 %v880, %v885
    %889 = vrot.lane.b32.xlu0 %v887, 32
    %v890 = vpop.permute.xlu0 %889
    %v892 = vadd.f32 %v882, %v890
    %v893 = vtanh.pop %v892
    %895 = vrot.lane.b32.xlu0 %v893, 32
    %v896 = vpop.permute.xlu0 %895
    %v898 = vmul.f32 %v880, %v896
    %v899 = vpack.c.bf16 %v898, %v898
    %v901 = vunpack.c.l.b16 %v899
    %v902 = vpack.c.b16 %v901, %v901
    %903 = vrot.lane.b32.xlu0 %v902, 64
    %v904 = vpop.permute.xlu0 %903
    %s906 = smul.addr %s825, 4
    %s907 = scalar_lea.vmem [#allocation11], %s906
    %908 = vst.msk [vmem:[%s907] sm:$0xf] %vm319, %v904
    %910 = vrot.lane.b32.xlu0 %v898, 64
    %v911 = vpop.permute.xlu0 %910
    %913 = vst.msk [vmem:[#allocation3] sm:$0xff] %vm237, %v911
    %915 = vrot.lane.b32.xlu0 %v892, 96
    %v916 = vpop.permute.xlu0 %915
    %918 = vst.msk [vmem:[#allocation4] sm:$0xff] %vm237, %v916
    // Predicated region
    $region34: #{tpu_custom_call.1} parent=1 // pred_check
      _
    $region35: #{tpu_custom_call.1} parent=1 // pred_check_branch
      %920 = sbr.rel (0) target = $region37
    $region36: #{tpu_custom_call.1} parent=1 // pred_region
      %s921 = smul.u32 0, 2
      %s922 = ssub.s32 0, %s921
      %s923 = smul.u32 0, %s922
      %s924 = sadd.s32 0, %s923
      %s925 = smul.u32 8, %s924
      %s927 = ssub.s32 512, 512
      %928 = vsyncadd [#allocation7], %s927
      %s929 = smul.addr %s925, 64
      %s930 = scalar_lea.hbm %s4, %s929
      %s931 = sshll.u32 [#allocation11], 4
      %s932 = int_to_ptr.vmem [resolvable:$true] %s931
      %937 = dma.vmem_to_hbm [thread:$0]  %s932, 512, %s930, [#allocation7], 64, 64, 4
    $region37: #{tpu_custom_call.1} parent=1 // pred_fallthru
      _
    // Predicated region
    $region38: #{tpu_custom_call.1} parent=1 // pred_check
      _
    $region39: #{tpu_custom_call.1} parent=1 // pred_check_branch
      %939 = sbr.rel (0) target = $region41
    $region40: #{tpu_custom_call.1} parent=1 // pred_region
      %940 = dma.done [#allocation7], 512
    $region41: #{tpu_custom_call.1} parent=1 // pred_fallthru
      _
    %941 = vsyncpa [#allocation6], 1
    %942 = vsyncpa [#allocation9], 1
    %943 = vsyncpa [#allocation7], 1

</llo_original>
